<compile_context>
chip_gen: v6e
topology: v6e:2x2x1
jax: 0.10.0
libtpu: 0.0.40
codegen_flags: <defaults>
</compile_context>

<pallas_src>
import math

import jax
import jax.numpy as jnp
from jax.experimental import pallas as pl
from jax.experimental.pallas import tpu as pltpu

PROT_DIM = 100          # Encoder.input_dim
HID = 64                # Encoder.hid_dim
N_LAYERS = 3
KSIZE = 5
PAD = (KSIZE - 1) // 2
ENC_SCALE = math.sqrt(0.5)   # Encoder.scale


# ------------------------------------------------------------------- kernel
def encoder_kernel(prot_ref, fcw_ref, fcb_ref, cw_ref, cb_ref, out_ref):
    """Fused Encoder forward for a block of `BB` sequences, channels-last.

    prot_ref : [BB, L, PROT_DIM]
    fcw_ref  : [PROT_DIM, HID]                fcb_ref : [1, HID]
    cw_ref   : [N_LAYERS, KSIZE*HID, 2*HID]   (wflat[k*HID + c, o] == W_torch[o, c, k])
    cb_ref   : [N_LAYERS, 1, 2*HID]
    out_ref  : [BB, L, HID]
    """
    BB, L, _ = prot_ref.shape

    # Flatten the batch block into rows -> one fat [BB*L, PROT_DIM] MXU matmul for fc.
    p2d = jnp.concatenate([prot_ref[b] for b in range(BB)], axis=0)
    x = jnp.dot(p2d, fcw_ref[...],
                preferred_element_type=jnp.float32) + fcb_ref[...]        # [BB*L, HID]

    zpad = jnp.zeros((PAD, HID), jnp.float32)
    for layer in range(N_LAYERS):     # static unroll; weights stay VMEM-resident
        # TODO(synk): nn.Dropout before each conv is identity under inference semantics.
        # Per-sequence zero-padded im2col, stacked into one lane-dense
        # [BB*L, KSIZE*HID] = [BB*L, 320] slab -> a single 320-deep MXU matmul.
        slabs = []
        for b in range(BB):
            xb = x[b * L:(b + 1) * L, :]
            xpad = jnp.concatenate([zpad, xb, zpad], axis=0)              # [L+K-1, HID]
            slabs.append(
                jnp.concatenate([xpad[k:k + L, :] for k in range(KSIZE)], axis=1))
        slab = jnp.concatenate(slabs, axis=0)                             # [BB*L, K*HID]

        acc = jnp.dot(slab, cw_ref[layer],
                      preferred_element_type=jnp.float32) + cb_ref[layer]  # [BB*L, 2*HID]
        # GLU over channels (first half = values, second half = gate),
        # then residual + sqrt(0.5) scale, all fused as the matmul epilogue.
        a = acc[:, :HID]
        g = acc[:, HID:]
        x = (a * (1.0 / (1.0 + jnp.exp(-g))) + x) * ENC_SCALE

    for b in range(BB):
        out_ref[b, :, :] = x[b * L:(b + 1) * L, :]


# ------------------------------------------------------------------ wrapper
def encoder_forward(protein, params, *, block_b=None):
    """protein: [B, L, PROT_DIM] float32 -> [B, L, HID] float32."""
    B, L, _ = protein.shape
    fcw, fcb, cw, cb = params

    if block_b is None:
        block_b = math.gcd(B, 8)      # fatten MXU M-dim / amortize grid-step overhead
    assert B % block_b == 0, "batch must be divisible by block_b"
    grid = (B // block_b,)

    def bcast_spec(shape):
        n = len(shape)
        return pl.BlockSpec(shape, lambda i: (0,) * n)

    flops = B * (2 * L * PROT_DIM * HID
                 + N_LAYERS * 2 * L * (KSIZE * HID) * (2 * HID))
    transcendentals = B * N_LAYERS * L * HID
    bytes_accessed = 4 * (B * L * PROT_DIM + B * L * HID
                          + PROT_DIM * HID + HID
                          + N_LAYERS * (KSIZE * HID * 2 * HID + 2 * HID))

    return pl.pallas_call(
        encoder_kernel,
        out_shape=jax.ShapeDtypeStruct((B, L, HID), jnp.float32),
        grid=grid,
        in_specs=[
            pl.BlockSpec((block_b, L, PROT_DIM), lambda i: (i, 0, 0)),   # batch block
            bcast_spec(fcw.shape),
            bcast_spec(fcb.shape),
            bcast_spec(cw.shape),
            bcast_spec(cb.shape),
        ],
        out_specs=pl.BlockSpec((block_b, L, HID), lambda i: (i, 0, 0)),
        compiler_params=pltpu.CompilerParams(
            dimension_semantics=("parallel",)),
        cost_estimate=pl.CostEstimate(flops=flops,
                                      transcendentals=transcendentals,
                                      bytes_accessed=bytes_accessed),
    )(protein, fcw, fcb, cw, cb)


# --------------------------------------------------------------- parameters
def init_params(key):
    """PyTorch-default uniform init; conv weight is pre-flattened to [K*C_in, 2*C_out].

    To import torch weights:  wflat = W.permute(2, 1, 0).reshape(K*C_in, 2*C_out).
    """
    k0, k1, k2, k3 = jax.random.split(key, 4)
    bf = 1.0 / math.sqrt(PROT_DIM)
    fcw = jax.random.uniform(k0, (PROT_DIM, HID), jnp.float32, -bf, bf)
    fcb = jax.random.uniform(k1, (1, HID), jnp.float32, -bf, bf)
    bc = 1.0 / math.sqrt(HID * KSIZE)
    cw = jax.random.uniform(k2, (N_LAYERS, KSIZE * HID, 2 * HID), jnp.float32, -bc, bc)
    cb = jax.random.uniform(k3, (N_LAYERS, 1, 2 * HID), jnp.float32, -bc, bc)
    return (fcw, fcb, cw, cb)


# ---------------------------------------------------------- pure-JAX reference
def encoder_reference(protein, params):
    fcw, fcb, cw, cb = params
    B, L, _ = protein.shape
    x = jnp.einsum("blp,ph->blh", protein, fcw,
                   precision=jax.lax.Precision.HIGHEST) + fcb
    for layer in range(N_LAYERS):
        xp = jnp.pad(x, ((0, 0), (PAD, PAD), (0, 0)))
        slab = jnp.concatenate([xp[:, k:k + L, :] for k in range(KSIZE)], axis=-1)
        acc = jnp.einsum("blc,co->blo", slab, cw[layer],
                         precision=jax.lax.Precision.HIGHEST) + cb[layer]
        a, g = acc[..., :HID], acc[..., HID:]
        x = (a * (1.0 / (1.0 + jnp.exp(-g))) + x) * ENC_SCALE
    return x


if __name__ == "__main__":
    key = jax.random.PRNGKey(0)
    kp, kx = jax.random.split(key)

    B, L = 2, 16                      # small shapes consistent with the module
    params = init_params(kp)
    protein = jax.random.normal(kx, (B, L, PROT_DIM), jnp.float32)

    out = jax.jit(encoder_forward)(protein, params)
    jax.block_until_ready(out)
    assert out.shape == (B, L, HID)

    ref = encoder_reference(protein, params)
    err = float(jnp.max(jnp.abs(out - ref)))
    assert err < 2e-3, f"max abs err vs reference: {err}"
    print("KERNEL_OK")
</pallas_src>

<mosaic_0001>
module attributes {stable_mosaic.version = 11 : i64} {
  func.func @encoder_kernel(%arg0: i32, %arg1: memref<2x16x100xf32, #tpu.memory_space<vmem>>, %arg2: memref<100x64xf32, #tpu.memory_space<vmem>>, %arg3: memref<1x64xf32, #tpu.memory_space<vmem>>, %arg4: memref<3x320x128xf32, #tpu.memory_space<vmem>>, %arg5: memref<3x1x128xf32, #tpu.memory_space<vmem>>, %arg6: memref<2x16x64xf32, #tpu.memory_space<vmem>>) attributes {dimension_semantics = [#tpu.dimension_semantics<parallel>], iteration_bounds = array<i64: 1>, scalar_prefetch = 0 : i64, scratch_operands = 0 : i64, tpu.core_type = #tpu.core_type<tc>, window_params = [{transform_indices = @transform_0, window_bounds = array<i64: 2, 16, 100>}, {pipeline_mode = #tpu.pipeline_mode<synchronous>, transform_indices = @transform_1, window_bounds = array<i64: 100, 64>}, {pipeline_mode = #tpu.pipeline_mode<synchronous>, transform_indices = @transform_2, window_bounds = array<i64: 1, 64>}, {pipeline_mode = #tpu.pipeline_mode<synchronous>, transform_indices = @transform_3, window_bounds = array<i64: 3, 320, 128>}, {pipeline_mode = #tpu.pipeline_mode<synchronous>, transform_indices = @transform_4, window_bounds = array<i64: 3, 1, 128>}, {transform_indices = @transform_5, window_bounds = array<i64: 2, 16, 64>}]} {
    %c0 = arith.constant 0 : index
    %c0_0 = arith.constant 0 : index
    %c0_1 = arith.constant 0 : index
    %0 = vector.load %arg1[%c0, %c0_0, %c0_1] : memref<2x16x100xf32, #tpu.memory_space<vmem>>, vector<1x16x100xf32>
    %1 = vector.shape_cast %0 : vector<1x16x100xf32> to vector<16x100xf32>
    %c1 = arith.constant 1 : index
    %c0_2 = arith.constant 0 : index
    %c0_3 = arith.constant 0 : index
    %2 = vector.load %arg1[%c1, %c0_2, %c0_3] : memref<2x16x100xf32, #tpu.memory_space<vmem>>, vector<1x16x100xf32>
    %3 = vector.shape_cast %2 : vector<1x16x100xf32> to vector<16x100xf32>
    %4 = tpu.concatenate %1, %3 in 0 : vector<16x100xf32>, vector<16x100xf32> -> vector<32x100xf32>
    %c0_4 = arith.constant 0 : index
    %c0_5 = arith.constant 0 : index
    %5 = vector.load %arg2[%c0_4, %c0_5] : memref<100x64xf32, #tpu.memory_space<vmem>>, vector<100x64xf32>
    %cst = arith.constant dense<0.000000e+00> : vector<32x64xf32>
    %6 = tpu.matmul %4, %5, %cst {dimension_numbers = #tpu.dot_dimension_numbers<[1], [0], [0], [1], [0, 0, 1, 1], [], []>} : vector<32x100xf32>, vector<100x64xf32>, vector<32x64xf32> -> vector<32x64xf32>
    %c0_6 = arith.constant 0 : index
    %c0_7 = arith.constant 0 : index
    %7 = vector.load %arg3[%c0_6, %c0_7] : memref<1x64xf32, #tpu.memory_space<vmem>>, vector<1x64xf32>
    %8 = vector.broadcast %7 : vector<1x64xf32> to vector<32x64xf32>
    %9 = arith.addf %6, %8 : vector<32x64xf32>
    %cst_8 = arith.constant 0.000000e+00 : f32
    %10 = vector.broadcast %cst_8 : f32 to vector<2x64xf32>
    %11 = vector.extract_strided_slice %9 {offsets = [0, 0], sizes = [16, 64], strides = [1, 1]} : vector<32x64xf32> to vector<16x64xf32>
    %12 = tpu.concatenate %10, %11, %10 in 0 : vector<2x64xf32>, vector<16x64xf32>, vector<2x64xf32> -> vector<20x64xf32>
    %13 = vector.extract_strided_slice %12 {offsets = [0, 0], sizes = [16, 64], strides = [1, 1]} : vector<20x64xf32> to vector<16x64xf32>
    %14 = vector.extract_strided_slice %12 {offsets = [1, 0], sizes = [16, 64], strides = [1, 1]} : vector<20x64xf32> to vector<16x64xf32>
    %15 = vector.extract_strided_slice %12 {offsets = [2, 0], sizes = [16, 64], strides = [1, 1]} : vector<20x64xf32> to vector<16x64xf32>
    %16 = vector.extract_strided_slice %12 {offsets = [3, 0], sizes = [16, 64], strides = [1, 1]} : vector<20x64xf32> to vector<16x64xf32>
    %17 = vector.extract_strided_slice %12 {offsets = [4, 0], sizes = [16, 64], strides = [1, 1]} : vector<20x64xf32> to vector<16x64xf32>
    %18 = tpu.concatenate %13, %14, %15, %16, %17 in 1 : vector<16x64xf32>, vector<16x64xf32>, vector<16x64xf32>, vector<16x64xf32>, vector<16x64xf32> -> vector<16x320xf32>
    %19 = vector.extract_strided_slice %9 {offsets = [16, 0], sizes = [16, 64], strides = [1, 1]} : vector<32x64xf32> to vector<16x64xf32>
    %20 = tpu.concatenate %10, %19, %10 in 0 : vector<2x64xf32>, vector<16x64xf32>, vector<2x64xf32> -> vector<20x64xf32>
    %21 = vector.extract_strided_slice %20 {offsets = [0, 0], sizes = [16, 64], strides = [1, 1]} : vector<20x64xf32> to vector<16x64xf32>
    %22 = vector.extract_strided_slice %20 {offsets = [1, 0], sizes = [16, 64], strides = [1, 1]} : vector<20x64xf32> to vector<16x64xf32>
    %23 = vector.extract_strided_slice %20 {offsets = [2, 0], sizes = [16, 64], strides = [1, 1]} : vector<20x64xf32> to vector<16x64xf32>
    %24 = vector.extract_strided_slice %20 {offsets = [3, 0], sizes = [16, 64], strides = [1, 1]} : vector<20x64xf32> to vector<16x64xf32>
    %25 = vector.extract_strided_slice %20 {offsets = [4, 0], sizes = [16, 64], strides = [1, 1]} : vector<20x64xf32> to vector<16x64xf32>
    %26 = tpu.concatenate %21, %22, %23, %24, %25 in 1 : vector<16x64xf32>, vector<16x64xf32>, vector<16x64xf32>, vector<16x64xf32>, vector<16x64xf32> -> vector<16x320xf32>
    %27 = tpu.concatenate %18, %26 in 0 : vector<16x320xf32>, vector<16x320xf32> -> vector<32x320xf32>
    %c0_9 = arith.constant 0 : index
    %c0_10 = arith.constant 0 : index
    %c0_11 = arith.constant 0 : index
    %28 = vector.load %arg4[%c0_9, %c0_10, %c0_11] : memref<3x320x128xf32, #tpu.memory_space<vmem>>, vector<1x320x128xf32>
    %29 = vector.shape_cast %28 : vector<1x320x128xf32> to vector<320x128xf32>
    %cst_12 = arith.constant dense<0.000000e+00> : vector<32x128xf32>
    %30 = tpu.matmul %27, %29, %cst_12 {dimension_numbers = #tpu.dot_dimension_numbers<[1], [0], [0], [1], [0, 0, 1, 1], [], []>} : vector<32x320xf32>, vector<320x128xf32>, vector<32x128xf32> -> vector<32x128xf32>
    %c0_13 = arith.constant 0 : index
    %c0_14 = arith.constant 0 : index
    %c0_15 = arith.constant 0 : index
    %31 = vector.load %arg5[%c0_13, %c0_14, %c0_15] : memref<3x1x128xf32, #tpu.memory_space<vmem>>, vector<1x1x128xf32>
    %32 = vector.shape_cast %31 : vector<1x1x128xf32> to vector<1x128xf32>
    %33 = vector.broadcast %32 : vector<1x128xf32> to vector<32x128xf32>
    %34 = arith.addf %30, %33 : vector<32x128xf32>
    %35 = vector.extract_strided_slice %34 {offsets = [0, 0], sizes = [32, 64], strides = [1, 1]} : vector<32x128xf32> to vector<32x64xf32>
    %36 = vector.extract_strided_slice %34 {offsets = [0, 64], sizes = [32, 64], strides = [1, 1]} : vector<32x128xf32> to vector<32x64xf32>
    %cst_16 = arith.constant 0.000000e+00 : f32
    %37 = vector.broadcast %cst_16 : f32 to vector<32x64xf32>
    %38 = arith.subf %37, %36 : vector<32x64xf32>
    %39 = math.exp %38 : vector<32x64xf32>
    %cst_17 = arith.constant 1.000000e+00 : f32
    %40 = vector.broadcast %cst_17 : f32 to vector<32x64xf32>
    %41 = arith.addf %40, %39 : vector<32x64xf32>
    %cst_18 = arith.constant 1.000000e+00 : f32
    %42 = vector.broadcast %cst_18 : f32 to vector<32x64xf32>
    %43 = arith.divf %42, %41 : vector<32x64xf32>
    %44 = arith.mulf %35, %43 : vector<32x64xf32>
    %45 = arith.addf %44, %9 : vector<32x64xf32>
    %cst_19 = arith.constant 0.707106769 : f32
    %46 = vector.broadcast %cst_19 : f32 to vector<32x64xf32>
    %47 = arith.mulf %45, %46 : vector<32x64xf32>
    %48 = vector.extract_strided_slice %47 {offsets = [0, 0], sizes = [16, 64], strides = [1, 1]} : vector<32x64xf32> to vector<16x64xf32>
    %49 = tpu.concatenate %10, %48, %10 in 0 : vector<2x64xf32>, vector<16x64xf32>, vector<2x64xf32> -> vector<20x64xf32>
    %50 = vector.extract_strided_slice %49 {offsets = [0, 0], sizes = [16, 64], strides = [1, 1]} : vector<20x64xf32> to vector<16x64xf32>
    %51 = vector.extract_strided_slice %49 {offsets = [1, 0], sizes = [16, 64], strides = [1, 1]} : vector<20x64xf32> to vector<16x64xf32>
    %52 = vector.extract_strided_slice %49 {offsets = [2, 0], sizes = [16, 64], strides = [1, 1]} : vector<20x64xf32> to vector<16x64xf32>
    %53 = vector.extract_strided_slice %49 {offsets = [3, 0], sizes = [16, 64], strides = [1, 1]} : vector<20x64xf32> to vector<16x64xf32>
    %54 = vector.extract_strided_slice %49 {offsets = [4, 0], sizes = [16, 64], strides = [1, 1]} : vector<20x64xf32> to vector<16x64xf32>
    %55 = tpu.concatenate %50, %51, %52, %53, %54 in 1 : vector<16x64xf32>, vector<16x64xf32>, vector<16x64xf32>, vector<16x64xf32>, vector<16x64xf32> -> vector<16x320xf32>
    %56 = vector.extract_strided_slice %47 {offsets = [16, 0], sizes = [16, 64], strides = [1, 1]} : vector<32x64xf32> to vector<16x64xf32>
    %57 = tpu.concatenate %10, %56, %10 in 0 : vector<2x64xf32>, vector<16x64xf32>, vector<2x64xf32> -> vector<20x64xf32>
    %58 = vector.extract_strided_slice %57 {offsets = [0, 0], sizes = [16, 64], strides = [1, 1]} : vector<20x64xf32> to vector<16x64xf32>
    %59 = vector.extract_strided_slice %57 {offsets = [1, 0], sizes = [16, 64], strides = [1, 1]} : vector<20x64xf32> to vector<16x64xf32>
    %60 = vector.extract_strided_slice %57 {offsets = [2, 0], sizes = [16, 64], strides = [1, 1]} : vector<20x64xf32> to vector<16x64xf32>
    %61 = vector.extract_strided_slice %57 {offsets = [3, 0], sizes = [16, 64], strides = [1, 1]} : vector<20x64xf32> to vector<16x64xf32>
    %62 = vector.extract_strided_slice %57 {offsets = [4, 0], sizes = [16, 64], strides = [1, 1]} : vector<20x64xf32> to vector<16x64xf32>
    %63 = tpu.concatenate %58, %59, %60, %61, %62 in 1 : vector<16x64xf32>, vector<16x64xf32>, vector<16x64xf32>, vector<16x64xf32>, vector<16x64xf32> -> vector<16x320xf32>
    %64 = tpu.concatenate %55, %63 in 0 : vector<16x320xf32>, vector<16x320xf32> -> vector<32x320xf32>
    %c1_20 = arith.constant 1 : index
    %c0_21 = arith.constant 0 : index
    %c0_22 = arith.constant 0 : index
    %65 = vector.load %arg4[%c1_20, %c0_21, %c0_22] : memref<3x320x128xf32, #tpu.memory_space<vmem>>, vector<1x320x128xf32>
    %66 = vector.shape_cast %65 : vector<1x320x128xf32> to vector<320x128xf32>
    %cst_23 = arith.constant dense<0.000000e+00> : vector<32x128xf32>
    %67 = tpu.matmul %64, %66, %cst_23 {dimension_numbers = #tpu.dot_dimension_numbers<[1], [0], [0], [1], [0, 0, 1, 1], [], []>} : vector<32x320xf32>, vector<320x128xf32>, vector<32x128xf32> -> vector<32x128xf32>
    %c1_24 = arith.constant 1 : index
    %c0_25 = arith.constant 0 : index
    %c0_26 = arith.constant 0 : index
    %68 = vector.load %arg5[%c1_24, %c0_25, %c0_26] : memref<3x1x128xf32, #tpu.memory_space<vmem>>, vector<1x1x128xf32>
    %69 = vector.shape_cast %68 : vector<1x1x128xf32> to vector<1x128xf32>
    %70 = vector.broadcast %69 : vector<1x128xf32> to vector<32x128xf32>
    %71 = arith.addf %67, %70 : vector<32x128xf32>
    %72 = vector.extract_strided_slice %71 {offsets = [0, 0], sizes = [32, 64], strides = [1, 1]} : vector<32x128xf32> to vector<32x64xf32>
    %73 = vector.extract_strided_slice %71 {offsets = [0, 64], sizes = [32, 64], strides = [1, 1]} : vector<32x128xf32> to vector<32x64xf32>
    %cst_27 = arith.constant 0.000000e+00 : f32
    %74 = vector.broadcast %cst_27 : f32 to vector<32x64xf32>
    %75 = arith.subf %74, %73 : vector<32x64xf32>
    %76 = math.exp %75 : vector<32x64xf32>
    %cst_28 = arith.constant 1.000000e+00 : f32
    %77 = vector.broadcast %cst_28 : f32 to vector<32x64xf32>
    %78 = arith.addf %77, %76 : vector<32x64xf32>
    %cst_29 = arith.constant 1.000000e+00 : f32
    %79 = vector.broadcast %cst_29 : f32 to vector<32x64xf32>
    %80 = arith.divf %79, %78 : vector<32x64xf32>
    %81 = arith.mulf %72, %80 : vector<32x64xf32>
    %82 = arith.addf %81, %47 : vector<32x64xf32>
    %cst_30 = arith.constant 0.707106769 : f32
    %83 = vector.broadcast %cst_30 : f32 to vector<32x64xf32>
    %84 = arith.mulf %82, %83 : vector<32x64xf32>
    %85 = vector.extract_strided_slice %84 {offsets = [0, 0], sizes = [16, 64], strides = [1, 1]} : vector<32x64xf32> to vector<16x64xf32>
    %86 = tpu.concatenate %10, %85, %10 in 0 : vector<2x64xf32>, vector<16x64xf32>, vector<2x64xf32> -> vector<20x64xf32>
    %87 = vector.extract_strided_slice %86 {offsets = [0, 0], sizes = [16, 64], strides = [1, 1]} : vector<20x64xf32> to vector<16x64xf32>
    %88 = vector.extract_strided_slice %86 {offsets = [1, 0], sizes = [16, 64], strides = [1, 1]} : vector<20x64xf32> to vector<16x64xf32>
    %89 = vector.extract_strided_slice %86 {offsets = [2, 0], sizes = [16, 64], strides = [1, 1]} : vector<20x64xf32> to vector<16x64xf32>
    %90 = vector.extract_strided_slice %86 {offsets = [3, 0], sizes = [16, 64], strides = [1, 1]} : vector<20x64xf32> to vector<16x64xf32>
    %91 = vector.extract_strided_slice %86 {offsets = [4, 0], sizes = [16, 64], strides = [1, 1]} : vector<20x64xf32> to vector<16x64xf32>
    %92 = tpu.concatenate %87, %88, %89, %90, %91 in 1 : vector<16x64xf32>, vector<16x64xf32>, vector<16x64xf32>, vector<16x64xf32>, vector<16x64xf32> -> vector<16x320xf32>
    %93 = vector.extract_strided_slice %84 {offsets = [16, 0], sizes = [16, 64], strides = [1, 1]} : vector<32x64xf32> to vector<16x64xf32>
    %94 = tpu.concatenate %10, %93, %10 in 0 : vector<2x64xf32>, vector<16x64xf32>, vector<2x64xf32> -> vector<20x64xf32>
    %95 = vector.extract_strided_slice %94 {offsets = [0, 0], sizes = [16, 64], strides = [1, 1]} : vector<20x64xf32> to vector<16x64xf32>
    %96 = vector.extract_strided_slice %94 {offsets = [1, 0], sizes = [16, 64], strides = [1, 1]} : vector<20x64xf32> to vector<16x64xf32>
    %97 = vector.extract_strided_slice %94 {offsets = [2, 0], sizes = [16, 64], strides = [1, 1]} : vector<20x64xf32> to vector<16x64xf32>
    %98 = vector.extract_strided_slice %94 {offsets = [3, 0], sizes = [16, 64], strides = [1, 1]} : vector<20x64xf32> to vector<16x64xf32>
    %99 = vector.extract_strided_slice %94 {offsets = [4, 0], sizes = [16, 64], strides = [1, 1]} : vector<20x64xf32> to vector<16x64xf32>
    %100 = tpu.concatenate %95, %96, %97, %98, %99 in 1 : vector<16x64xf32>, vector<16x64xf32>, vector<16x64xf32>, vector<16x64xf32>, vector<16x64xf32> -> vector<16x320xf32>
    %101 = tpu.concatenate %92, %100 in 0 : vector<16x320xf32>, vector<16x320xf32> -> vector<32x320xf32>
    %c2 = arith.constant 2 : index
    %c0_31 = arith.constant 0 : index
    %c0_32 = arith.constant 0 : index
    %102 = vector.load %arg4[%c2, %c0_31, %c0_32] : memref<3x320x128xf32, #tpu.memory_space<vmem>>, vector<1x320x128xf32>
    %103 = vector.shape_cast %102 : vector<1x320x128xf32> to vector<320x128xf32>
    %cst_33 = arith.constant dense<0.000000e+00> : vector<32x128xf32>
    %104 = tpu.matmul %101, %103, %cst_33 {dimension_numbers = #tpu.dot_dimension_numbers<[1], [0], [0], [1], [0, 0, 1, 1], [], []>} : vector<32x320xf32>, vector<320x128xf32>, vector<32x128xf32> -> vector<32x128xf32>
    %c2_34 = arith.constant 2 : index
    %c0_35 = arith.constant 0 : index
    %c0_36 = arith.constant 0 : index
    %105 = vector.load %arg5[%c2_34, %c0_35, %c0_36] : memref<3x1x128xf32, #tpu.memory_space<vmem>>, vector<1x1x128xf32>
    %106 = vector.shape_cast %105 : vector<1x1x128xf32> to vector<1x128xf32>
    %107 = vector.broadcast %106 : vector<1x128xf32> to vector<32x128xf32>
    %108 = arith.addf %104, %107 : vector<32x128xf32>
    %109 = vector.extract_strided_slice %108 {offsets = [0, 0], sizes = [32, 64], strides = [1, 1]} : vector<32x128xf32> to vector<32x64xf32>
    %110 = vector.extract_strided_slice %108 {offsets = [0, 64], sizes = [32, 64], strides = [1, 1]} : vector<32x128xf32> to vector<32x64xf32>
    %cst_37 = arith.constant 0.000000e+00 : f32
    %111 = vector.broadcast %cst_37 : f32 to vector<32x64xf32>
    %112 = arith.subf %111, %110 : vector<32x64xf32>
    %113 = math.exp %112 : vector<32x64xf32>
    %cst_38 = arith.constant 1.000000e+00 : f32
    %114 = vector.broadcast %cst_38 : f32 to vector<32x64xf32>
    %115 = arith.addf %114, %113 : vector<32x64xf32>
    %cst_39 = arith.constant 1.000000e+00 : f32
    %116 = vector.broadcast %cst_39 : f32 to vector<32x64xf32>
    %117 = arith.divf %116, %115 : vector<32x64xf32>
    %118 = arith.mulf %109, %117 : vector<32x64xf32>
    %119 = arith.addf %118, %84 : vector<32x64xf32>
    %cst_40 = arith.constant 0.707106769 : f32
    %120 = vector.broadcast %cst_40 : f32 to vector<32x64xf32>
    %121 = arith.mulf %119, %120 : vector<32x64xf32>
    %122 = vector.extract_strided_slice %121 {offsets = [0, 0], sizes = [16, 64], strides = [1, 1]} : vector<32x64xf32> to vector<16x64xf32>
    %c0_41 = arith.constant 0 : index
    %c0_42 = arith.constant 0 : index
    %c0_43 = arith.constant 0 : index
    %123 = vector.load %arg6[%c0_41, %c0_42, %c0_43] : memref<2x16x64xf32, #tpu.memory_space<vmem>>, vector<1x16x64xf32>
    %124 = vector.shape_cast %123 : vector<1x16x64xf32> to vector<16x64xf32>
    %125 = vector.shape_cast %122 : vector<16x64xf32> to vector<1x16x64xf32>
    tpu.vector_store %arg6[%c0_41, %c0_42, %c0_43], %125 {strides = array<i32>} : memref<2x16x64xf32, #tpu.memory_space<vmem>>, vector<1x16x64xf32>,
    %126 = vector.extract_strided_slice %121 {offsets = [16, 0], sizes = [16, 64], strides = [1, 1]} : vector<32x64xf32> to vector<16x64xf32>
    %c1_44 = arith.constant 1 : index
    %c0_45 = arith.constant 0 : index
    %c0_46 = arith.constant 0 : index
    %127 = vector.load %arg6[%c1_44, %c0_45, %c0_46] : memref<2x16x64xf32, #tpu.memory_space<vmem>>, vector<1x16x64xf32>
    %128 = vector.shape_cast %127 : vector<1x16x64xf32> to vector<16x64xf32>
    %129 = vector.shape_cast %126 : vector<16x64xf32> to vector<1x16x64xf32>
    tpu.vector_store %arg6[%c1_44, %c0_45, %c0_46], %129 {strides = array<i32>} : memref<2x16x64xf32, #tpu.memory_space<vmem>>, vector<1x16x64xf32>,
    return
  }
  func.func @transform_0(%arg0: i32) -> (i32, i32, i32) {
    %c0_i32 = arith.constant 0 : i32
    %c0_i32_0 = arith.constant 0 : i32
    %c0_i32_1 = arith.constant 0 : i32
    return %arg0, %c0_i32, %c0_i32_0 : i32, i32, i32
  }
  func.func @transform_1(%arg0: i32) -> (i32, i32) {
    %c0_i32 = arith.constant 0 : i32
    %c0_i32_0 = arith.constant 0 : i32
    %c0_i32_1 = arith.constant 0 : i32
    return %c0_i32, %c0_i32_0 : i32, i32
  }
  func.func @transform_2(%arg0: i32) -> (i32, i32) {
    %c0_i32 = arith.constant 0 : i32
    %c0_i32_0 = arith.constant 0 : i32
    %c0_i32_1 = arith.constant 0 : i32
    return %c0_i32, %c0_i32_0 : i32, i32
  }
  func.func @transform_3(%arg0: i32) -> (i32, i32, i32) {
    %c0_i32 = arith.constant 0 : i32
    %c0_i32_0 = arith.constant 0 : i32
    %c0_i32_1 = arith.constant 0 : i32
    %c0_i32_2 = arith.constant 0 : i32
    return %c0_i32, %c0_i32_0, %c0_i32_1 : i32, i32, i32
  }
  func.func @transform_4(%arg0: i32) -> (i32, i32, i32) {
    %c0_i32 = arith.constant 0 : i32
    %c0_i32_0 = arith.constant 0 : i32
    %c0_i32_1 = arith.constant 0 : i32
    %c0_i32_2 = arith.constant 0 : i32
    return %c0_i32, %c0_i32_0, %c0_i32_1 : i32, i32, i32
  }
  func.func @transform_5(%arg0: i32) -> (i32, i32, i32) {
    %c0_i32 = arith.constant 0 : i32
    %c0_i32_0 = arith.constant 0 : i32
    %c0_i32_1 = arith.constant 0 : i32
    return %arg0, %c0_i32, %c0_i32_0 : i32, i32, i32
  }
}

</mosaic_0001>

<llo_original>
// kernel: encoder_forward.1
$region0: #{encoder_forward.1}
  #allocation0 [shape = 'u32[]', space=smem, size = 0x4, offset = 0x4, fixed_abs, tag = 'smem constant byte address 0x4 - core index']
  #allocation1 [shape = 'u32[144,128]{1,0:T(1,128)}', space=vmem, size = 0x12000, scoped, tag = 'internal scratch']
  %s0 = inlined_call_operand.vmem [shape: f32[2,16,100], index: 0, kind: input, shape index: {}]
  %s1 = inlined_call_operand.vmem [shape: f32[100,64], index: 1, kind: input, shape index: {}]
  %s2 = inlined_call_operand.vmem [shape: f32[1,64], index: 2, kind: input, shape index: {}]
  %s3 = inlined_call_operand.hbm [shape: f32[3,320,128], index: 3, kind: input, shape index: {}]
  %s4 = inlined_call_operand.vmem [shape: f32[3,1,128], index: 4, kind: input, shape index: {}]
  %s5 = inlined_call_operand.hbm [shape: f32[2,16,64], index: 5, kind: output, shape index: {}]
  %s6 = sld [smem:[#allocation0]]
  $region34: #{encoder_forward.1} parent=0
    _
  %s8 = ssub.s32 1, %s6
  %s9 = scalar_select 0, %s8, %s6
  $region1: #{encoder_forward.1} parent=0
    #allocation2 [shape = 'u8[491520]{0}', space=vmem, size = 0x78000, scoped, tag = 'input window, operand 3, single buffered']
    #allocation3 [shape = 's32[1]{0}', space=sflag, size = 0x4, scoped, tag = 'scoped memory for encoder_forward.1']
    #allocation4 [shape = 's32[1]{0}', space=sflag, size = 0x4, scoped, tag = 'scoped memory for encoder_forward.1']
    #allocation5 [shape = 'u8[16384]{0}', space=vmem, size = 0x4000, scoped, tag = 'output window, operand 0, single buffered']
    %10 = vsyncpa [#allocation3], 0
    %11 = vsyncpa [#allocation4], 0
    // Predicated region
    $region2: #{encoder_forward.1} parent=1 // pred_check
      _
    $region3: #{encoder_forward.1} parent=1 // pred_check_branch
      %13 = sbr.rel (0) target = $region5
    $region4: #{encoder_forward.1} parent=1 // pred_region
      _
    $region5: #{encoder_forward.1} parent=1 // pred_fallthru
      _
    // Predicated region
    $region6: #{encoder_forward.1} parent=1 // pred_check
      _
    $region7: #{encoder_forward.1} parent=1 // pred_check_branch
      %15 = sbr.rel (0) target = $region9
    $region8: #{encoder_forward.1} parent=1 // pred_region
      _
    $region9: #{encoder_forward.1} parent=1 // pred_fallthru
      _
    // Predicated region
    $region10: #{encoder_forward.1} parent=1 // pred_check
      _
    $region11: #{encoder_forward.1} parent=1 // pred_check_branch
      %17 = sbr.rel (0) target = $region13
    $region12: #{encoder_forward.1} parent=1 // pred_region
      _
    $region13: #{encoder_forward.1} parent=1 // pred_fallthru
      _
    // Predicated region
    $region14: #{encoder_forward.1} parent=1 // pred_check
      _
    $region15: #{encoder_forward.1} parent=1 // pred_check_branch
      %19 = sbr.rel (0) target = $region17
    $region16: #{encoder_forward.1} parent=1 // pred_region
      %s21 = ssub.s32 15360, 15360
      %22 = vsyncadd [#allocation3], %s21
      %s23 = sshll.u32 [#allocation2], 4
      %s24 = int_to_ptr.vmem [resolvable:$true] %s23
      %29 = dma.hbm_to_vmem [thread:$0]  %s3, 15360, %s24, [#allocation3], 128, 128, 8
    $region17: #{encoder_forward.1} parent=1 // pred_fallthru
      _
    // Predicated region
    $region18: #{encoder_forward.1} parent=1 // pred_check
      _
    $region19: #{encoder_forward.1} parent=1 // pred_check_branch
      %31 = sbr.rel (0) target = $region21
    $region20: #{encoder_forward.1} parent=1 // pred_region
      _
    $region21: #{encoder_forward.1} parent=1 // pred_fallthru
      _
    // Predicated region
    $region22: #{encoder_forward.1} parent=1 // pred_check
      _
    $region23: #{encoder_forward.1} parent=1 // pred_check_branch
      %33 = sbr.rel (0) target = $region25
    $region24: #{encoder_forward.1} parent=1 // pred_region
      %34 = dma.done [#allocation3], 15360
    $region25: #{encoder_forward.1} parent=1 // pred_fallthru
      _
    %v35 = vld [vmem:[%s0] sm:$0xff]
    %v36 = vld [vmem:[%s0 + $0x8] sm:$0xff]
    %s37 = scalar_lea.vmem %s0, 16
    %v38 = vld [vmem:[%s37] sm:$0xff]
    %v39 = vld [vmem:[%s37 + $0x8] sm:$0xff]
    %v40 = vld [vmem:[%s1] sm:$0xff]
    %v41 = vld [vmem:[%s1 + $0x8] sm:$0xff]
    %v42 = vld [vmem:[%s1 + $0x10] sm:$0xff]
    %v43 = vld [vmem:[%s1 + $0x18] sm:$0xff]
    %v44 = vld [vmem:[%s1 + $0x20] sm:$0xff]
    %v45 = vld [vmem:[%s1 + $0x28] sm:$0xff]
    %v46 = vld [vmem:[%s1 + $0x30] sm:$0xff]
    %v47 = vld [vmem:[%s1 + $0x38] sm:$0xff]
    %v48 = vld [vmem:[%s1 + $0x40] sm:$0xff]
    %v49 = vld [vmem:[%s1 + $0x48] sm:$0xff]
    %v50 = vld [vmem:[%s1 + $0x50] sm:$0xff]
    %v51 = vld [vmem:[%s1 + $0x58] sm:$0xff]
    %v52 = vld [vmem:[%s1 + $0x60] sm:$0xf]
    %v53 = vld [vmem:[%s2] sm:$0x1]
    %v55 = vlaneseq
    %v56 = vshrl.u32 %v55, 7
    %v57 = vsub.s32 0, %v56
    %v58 = vrot.slane %v53, %v57
    %vm60 = vcmask 818176
    %v62 = vsel %vm60, %v35, 0
    %v65 = vsel %vm60, %v36, 0
    %v68 = vsel %vm60, %v38, 0
    %v71 = vsel %vm60, %v39, 0
    %vm73 = vcmask 1043456
    %v75 = vsel %vm73, %v52, 0
    %77 = vmatprep.subr.mxu0 0.0
    %78 = vmatpush1.msra.mxu0 0.0
    %79 = vmatprep.subr.mxu0 0.0
    %80 = vmatpush1.msra.mxu0 0.0
    %81 = vmatprep.subr.mxu0 0.0
    %82 = vmatpush1.msra.mxu0 0.0
    %83 = vmatprep.subr.mxu0 0.0
    %84 = vmatpush1.msra.mxu0 %v75
    %85 = vmatprep.subr.mxu0 0.0
    %86 = vmatpush1.msra.mxu0 %v51
    %87 = vmatprep.subr.mxu0 0.0
    %88 = vmatpush1.msra.mxu0 %v50
    %89 = vmatprep.subr.mxu0 0.0
    %90 = vmatpush1.msra.mxu0 %v49
    %91 = vmatprep.subr.mxu0 0.0
    %92 = vmatpush1.msra.mxu0 %v48
    %93 = vmatprep.subr.mxu0 0.0
    %94 = vmatpush1.msra.mxu0 %v47
    %95 = vmatprep.subr.mxu0 0.0
    %96 = vmatpush1.msra.mxu0 %v46
    %97 = vmatprep.subr.mxu0 0.0
    %98 = vmatpush1.msra.mxu0 %v45
    %99 = vmatprep.subr.mxu0 0.0
    %100 = vmatpush1.msra.mxu0 %v44
    %101 = vmatprep.subr.mxu0 0.0
    %102 = vmatpush1.msra.mxu0 %v43
    %103 = vmatprep.subr.mxu0 0.0
    %104 = vmatpush1.msra.mxu0 %v42
    %105 = vmatprep.subr.mxu0 0.0
    %106 = vmatpush1.msra.mxu0 %v41
    %107 = vmatprep.subr.mxu0 0.0
    %108 = vmatpush1.msra.mxu0 %v40
    %109 = vmatprep.subr.mxu0 0.0
    %110 = vmatpush2.msra.mxu0 0.0
    %111 = vmatprep.subr.mxu0 0.0
    %112 = vmatpush2.msra.mxu0 0.0
    %113 = vmatprep.subr.mxu0 0.0
    %114 = vmatpush2.msra.mxu0 0.0
    %115 = vmatprep.subr.mxu0 0.0
    %116 = vmatpush2.msra.mxu0 0.0
    %117 = vmatprep.subr.mxu0 0.0
    %118 = vmatpush2.msra.mxu0 0.0
    %119 = vmatprep.subr.mxu0 0.0
    %120 = vmatpush2.msra.mxu0 0.0
    %121 = vmatprep.subr.mxu0 0.0
    %122 = vmatpush2.msra.mxu0 0.0
    %123 = vmatprep.subr.mxu0 0.0
    %124 = vmatpush2.msra.mxu0 0.0
    %125 = vmatprep.subr.mxu0 0.0
    %126 = vmatpush2.msra.mxu0 0.0
    %127 = vmatprep.subr.mxu0 0.0
    %128 = vmatpush2.msra.mxu0 0.0
    %129 = vmatprep.subr.mxu0 0.0
    %130 = vmatpush2.msra.mxu0 0.0
    %131 = vmatprep.subr.mxu0 0.0
    %132 = vmatpush2.msra.mxu0 0.0
    %133 = vmatprep.subr.mxu0 0.0
    %134 = vmatpush2.msra.mxu0 0.0
    %135 = vmatprep.subr.mxu0 0.0
    %136 = vmatpush2.msra.mxu0 0.0
    %137 = vmatprep.subr.mxu0 0.0
    %138 = vmatpush2.msra.mxu0 0.0
    %139 = vmatprep.subr.mxu0 0.0
    %140 = vmatpush2.msra.mxu0 0.0
    %141 = vmatprep.mubr.f32.mxu0 0.0
    %142 = vmatmul.mubr.f32.gmra.mxu0 %v62
    %v143 = vpop.f32.mrf.mxu0
    %v144 = vadd.f32 %v58, %v143
    %v145 = vpop.f32.mrf.mxu0
    %146 = vmatprep.mubr.f32.mxu0 0.0
    %147 = vmatmul.mubr.f32.gmra.mxu0 %v65
    %v148 = vpop.f32.mrf.mxu0
    %v149 = vadd.f32 %v58, %v148
    %v150 = vpop.f32.mrf.mxu0
    %151 = vmatprep.mubr.f32.mxu0 0.0
    %152 = vmatmul.mubr.f32.gmra.mxu0 %v68
    %v153 = vpop.f32.mrf.mxu0
    %v154 = vadd.f32 %v58, %v153
    %v155 = vpop.f32.mrf.mxu0
    %156 = vmatprep.mubr.f32.mxu0 0.0
    %157 = vmatmul.mubr.f32.gmra.mxu0 %v71
    %v158 = vpop.f32.mrf.mxu0
    %v159 = vadd.f32 %v58, %v158
    %v160 = vpop.f32.mrf.mxu0
    %161 = vdwg.mxu0
    %vm164 = vcmask 1041408
    %v165 = vrot.slane %v144, 6
    %v166 = vrot.slane %v149, 6
    %v167 = vsel %vm164, %v165, %v166
    %v171 = vsel %vm164, 0.0, %v165
    %v172 = vsel %vm164, %v166, 0.0
    %vm175 = vcmask 1046528
    %v176 = vrot.slane %v171, 1
    %v177 = vrot.slane %v167, 1
    %v178 = vsel %vm175, %v176, %v177
    %v179 = vrot.slane %v172, 1
    %v180 = vsel %vm175, %v177, %v179
    %181 = vrot.lane.b32.xlu0 %v178, 64
    %v182 = vpop.permute.xlu0 %181
    %183 = vrot.lane.b32.xlu0 %v180, 64
    %v184 = vpop.permute.xlu0 %183
    %vm187 = vcmask 1045504
    %v188 = vrot.slane %v171, 2
    %v189 = vrot.slane %v167, 2
    %v190 = vsel %vm187, %v188, %v189
    %v191 = vrot.slane %v172, 2
    %v192 = vsel %vm187, %v189, %v191
    %vm195 = vcmask 1044480
    %v196 = vrot.slane %v171, 3
    %v197 = vrot.slane %v167, 3
    %v198 = vsel %vm195, %v196, %v197
    %v199 = vrot.slane %v172, 3
    %v200 = vsel %vm195, %v197, %v199
    %201 = vrot.lane.b32.xlu0 %v198, 64
    %v202 = vpop.permute.xlu0 %201
    %203 = vrot.lane.b32.xlu0 %v200, 64
    %v204 = vpop.permute.xlu0 %203
    %v207 = vrot.slane %v171, 4
    %v208 = vrot.slane %v167, 4
    %v209 = vsel %vm73, %v207, %v208
    %v210 = vrot.slane %v172, 4
    %v211 = vsel %vm73, %v208, %v210
    %vm212 = vcmask 523264
    %v213 = vsel %vm212, %v171, %v182
    %v214 = vsel %vm212, %v167, %v184
    %v215 = vsel %vm212, %v190, %v202
    %v216 = vsel %vm212, %v192, %v204
    %v219 = vrot.slane %v154, 6
    %v220 = vrot.slane %v159, 6
    %v221 = vsel %vm164, %v219, %v220
    %v225 = vsel %vm164, 0.0, %v219
    %v226 = vsel %vm164, %v220, 0.0
    %v229 = vrot.slane %v225, 1
    %v230 = vrot.slane %v221, 1
    %v231 = vsel %vm175, %v229, %v230
    %v232 = vrot.slane %v226, 1
    %v233 = vsel %vm175, %v230, %v232
    %234 = vrot.lane.b32.xlu0 %v231, 64
    %v235 = vpop.permute.xlu0 %234
    %236 = vrot.lane.b32.xlu0 %v233, 64
    %v237 = vpop.permute.xlu0 %236
    %v240 = vrot.slane %v225, 2
    %v241 = vrot.slane %v221, 2
    %v242 = vsel %vm187, %v240, %v241
    %v243 = vrot.slane %v226, 2
    %v244 = vsel %vm187, %v241, %v243
    %v247 = vrot.slane %v225, 3
    %v248 = vrot.slane %v221, 3
    %v249 = vsel %vm195, %v247, %v248
    %v250 = vrot.slane %v226, 3
    %v251 = vsel %vm195, %v248, %v250
    %252 = vrot.lane.b32.xlu0 %v249, 64
    %v253 = vpop.permute.xlu0 %252
    %254 = vrot.lane.b32.xlu0 %v251, 64
    %v255 = vpop.permute.xlu0 %254
    %v258 = vrot.slane %v225, 4
    %v259 = vrot.slane %v221, 4
    %v260 = vsel %vm73, %v258, %v259
    %v261 = vrot.slane %v226, 4
    %v262 = vsel %vm73, %v259, %v261
    %v263 = vsel %vm212, %v225, %v235
    %v264 = vsel %vm212, %v221, %v237
    %v265 = vsel %vm212, %v242, %v253
    %v266 = vsel %vm212, %v244, %v255
    %v267 = vld [vmem:[#allocation2] sm:$0xff]
    %v268 = vld [vmem:[#allocation2 + $0x8] sm:$0xff]
    %v269 = vld [vmem:[#allocation2 + $0x10] sm:$0xff]
    %v270 = vld [vmem:[#allocation2 + $0x18] sm:$0xff]
    %v271 = vld [vmem:[#allocation2 + $0x20] sm:$0xff]
    %v272 = vld [vmem:[#allocation2 + $0x28] sm:$0xff]
    %v273 = vld [vmem:[#allocation2 + $0x30] sm:$0xff]
    %v274 = vld [vmem:[#allocation2 + $0x38] sm:$0xff]
    %v275 = vld [vmem:[#allocation2 + $0x40] sm:$0xff]
    %v276 = vld [vmem:[#allocation2 + $0x48] sm:$0xff]
    %v277 = vld [vmem:[#allocation2 + $0x50] sm:$0xff]
    %v278 = vld [vmem:[#allocation2 + $0x58] sm:$0xff]
    %v279 = vld [vmem:[#allocation2 + $0x60] sm:$0xff]
    %v280 = vld [vmem:[#allocation2 + $0x68] sm:$0xff]
    %v281 = vld [vmem:[#allocation2 + $0x70] sm:$0xff]
    %v282 = vld [vmem:[#allocation2 + $0x78] sm:$0xff]
    %v283 = vld [vmem:[#allocation2 + $0x80] sm:$0xff]
    %v284 = vld [vmem:[#allocation2 + $0x88] sm:$0xff]
    %v285 = vld [vmem:[#allocation2 + $0x90] sm:$0xff]
    %v286 = vld [vmem:[#allocation2 + $0x98] sm:$0xff]
    %v287 = vld [vmem:[#allocation2 + $0xa0] sm:$0xff]
    %v288 = vld [vmem:[#allocation2 + $0xa8] sm:$0xff]
    %v289 = vld [vmem:[#allocation2 + $0xb0] sm:$0xff]
    %v290 = vld [vmem:[#allocation2 + $0xb8] sm:$0xff]
    %v291 = vld [vmem:[#allocation2 + $0xc0] sm:$0xff]
    %v292 = vld [vmem:[#allocation2 + $0xc8] sm:$0xff]
    %v293 = vld [vmem:[#allocation2 + $0xd0] sm:$0xff]
    %v294 = vld [vmem:[#allocation2 + $0xd8] sm:$0xff]
    %v295 = vld [vmem:[#allocation2 + $0xe0] sm:$0xff]
    %v296 = vld [vmem:[#allocation2 + $0xe8] sm:$0xff]
    %v297 = vld [vmem:[#allocation2 + $0xf0] sm:$0xff]
    %v298 = vld [vmem:[#allocation2 + $0xf8] sm:$0xff]
    %v299 = vld [vmem:[#allocation2 + $0x100] sm:$0xff]
    %v300 = vld [vmem:[#allocation2 + $0x108] sm:$0xff]
    %v301 = vld [vmem:[#allocation2 + $0x110] sm:$0xff]
    %v302 = vld [vmem:[#allocation2 + $0x118] sm:$0xff]
    %v303 = vld [vmem:[#allocation2 + $0x120] sm:$0xff]
    %v304 = vld [vmem:[#allocation2 + $0x128] sm:$0xff]
    %v305 = vld [vmem:[#allocation2 + $0x130] sm:$0xff]
    %v306 = vld [vmem:[#allocation2 + $0x138] sm:$0xff]
    %v307 = vld [vmem:[%s4] sm:$0x1]
    %v309 = vlaneseq
    %v310 = vshrl.u32 %v309, 7
    %v311 = vsub.s32 0, %v310
    %v312 = vrot.slane %v307, %v311
    %v314 = vsel %vm212, %v209, 0
    %v316 = vsel %vm212, %v211, 0
    %v318 = vsel %vm212, %v260, 0
    %v320 = vsel %vm212, %v262, 0
    %322 = vmatprep.subr.mxu0 0.0
    %323 = vmatpush1.msra.mxu0 %v282
    %324 = vmatprep.subr.mxu0 0.0
    %325 = vmatpush1.msra.mxu0 %v281
    %326 = vmatprep.subr.mxu0 0.0
    %327 = vmatpush1.msra.mxu0 %v280
    %328 = vmatprep.subr.mxu0 0.0
    %329 = vmatpush1.msra.mxu0 %v279
    %330 = vmatprep.subr.mxu0 0.0
    %331 = vmatpush1.msra.mxu0 %v278
    %332 = vmatprep.subr.mxu0 0.0
    %333 = vmatpush1.msra.mxu0 %v277
    %334 = vmatprep.subr.mxu0 0.0
    %335 = vmatpush1.msra.mxu0 %v276
    %336 = vmatprep.subr.mxu0 0.0
    %337 = vmatpush1.msra.mxu0 %v275
    %338 = vmatprep.subr.mxu0 0.0
    %339 = vmatpush1.msra.mxu0 %v274
    %340 = vmatprep.subr.mxu0 0.0
    %341 = vmatpush1.msra.mxu0 %v273
    %342 = vmatprep.subr.mxu0 0.0
    %343 = vmatpush1.msra.mxu0 %v272
    %344 = vmatprep.subr.mxu0 0.0
    %345 = vmatpush1.msra.mxu0 %v271
    %346 = vmatprep.subr.mxu0 0.0
    %347 = vmatpush1.msra.mxu0 %v270
    %348 = vmatprep.subr.mxu0 0.0
    %349 = vmatpush1.msra.mxu0 %v269
    %350 = vmatprep.subr.mxu0 0.0
    %351 = vmatpush1.msra.mxu0 %v268
    %352 = vmatprep.subr.mxu0 0.0
    %353 = vmatpush1.msra.mxu0 %v267
    %354 = vmatprep.subr.mxu0 0.0
    %355 = vmatpush2.msra.mxu0 %v298
    %356 = vmatprep.subr.mxu0 0.0
    %357 = vmatpush2.msra.mxu0 %v297
    %358 = vmatprep.subr.mxu0 0.0
    %359 = vmatpush2.msra.mxu0 %v296
    %360 = vmatprep.subr.mxu0 0.0
    %361 = vmatpush2.msra.mxu0 %v295
    %362 = vmatprep.subr.mxu0 0.0
    %363 = vmatpush2.msra.mxu0 %v294
    %364 = vmatprep.subr.mxu0 0.0
    %365 = vmatpush2.msra.mxu0 %v293
    %366 = vmatprep.subr.mxu0 0.0
    %367 = vmatpush2.msra.mxu0 %v292
    %368 = vmatprep.subr.mxu0 0.0
    %369 = vmatpush2.msra.mxu0 %v291
    %370 = vmatprep.subr.mxu0 0.0
    %371 = vmatpush2.msra.mxu0 %v290
    %372 = vmatprep.subr.mxu0 0.0
    %373 = vmatpush2.msra.mxu0 %v289
    %374 = vmatprep.subr.mxu0 0.0
    %375 = vmatpush2.msra.mxu0 %v288
    %376 = vmatprep.subr.mxu0 0.0
    %377 = vmatpush2.msra.mxu0 %v287
    %378 = vmatprep.subr.mxu0 0.0
    %379 = vmatpush2.msra.mxu0 %v286
    %380 = vmatprep.subr.mxu0 0.0
    %381 = vmatpush2.msra.mxu0 %v285
    %382 = vmatprep.subr.mxu0 0.0
    %383 = vmatpush2.msra.mxu0 %v284
    %384 = vmatprep.subr.mxu0 0.0
    %385 = vmatpush2.msra.mxu0 %v283
    %386 = vmatprep.mubr.f32.mxu0 %v215
    %387 = vmatmul.mubr.f32.gmra.mxu0 %v213
    %v388 = vpop.f32.mrf.mxu0
    %v389 = vadd.f32 %v312, %v388
    %v390 = vpop.f32.mrf.mxu0
    %391 = vmatprep.mubr.f32.mxu0 %v216
    %392 = vmatmul.mubr.f32.gmra.mxu0 %v214
    %v393 = vpop.f32.mrf.mxu0
    %v394 = vadd.f32 %v312, %v393
    %v395 = vpop.f32.mrf.mxu0
    %396 = vmatprep.mubr.f32.mxu0 %v265
    %397 = vmatmul.mubr.f32.gmra.mxu0 %v263
    %v398 = vpop.f32.mrf.mxu0
    %v399 = vadd.f32 %v312, %v398
    %v400 = vpop.f32.mrf.mxu0
    %401 = vmatprep.mubr.f32.mxu0 %v266
    %402 = vmatmul.mubr.f32.gmra.mxu0 %v264
    %v403 = vpop.f32.mrf.mxu0
    %v404 = vadd.f32 %v312, %v403
    %v405 = vpop.f32.mrf.mxu0
    %406 = vdwg.mxu0
    %407 = vmatprep.subr.mxu0 0.0
    %408 = vmatpush1.msra.mxu0 0.0
    %409 = vmatprep.subr.mxu0 0.0
    %410 = vmatpush1.msra.mxu0 0.0
    %411 = vmatprep.subr.mxu0 0.0
    %412 = vmatpush1.msra.mxu0 0.0
    %413 = vmatprep.subr.mxu0 0.0
    %414 = vmatpush1.msra.mxu0 0.0
    %415 = vmatprep.subr.mxu0 0.0
    %416 = vmatpush1.msra.mxu0 0.0
    %417 = vmatprep.subr.mxu0 0.0
    %418 = vmatpush1.msra.mxu0 0.0
    %419 = vmatprep.subr.mxu0 0.0
    %420 = vmatpush1.msra.mxu0 0.0
    %421 = vmatprep.subr.mxu0 0.0
    %422 = vmatpush1.msra.mxu0 0.0
    %423 = vmatprep.subr.mxu0 0.0
    %424 = vmatpush1.msra.mxu0 %v306
    %425 = vmatprep.subr.mxu0 0.0
    %426 = vmatpush1.msra.mxu0 %v305
    %427 = vmatprep.subr.mxu0 0.0
    %428 = vmatpush1.msra.mxu0 %v304
    %429 = vmatprep.subr.mxu0 0.0
    %430 = vmatpush1.msra.mxu0 %v303
    %431 = vmatprep.subr.mxu0 0.0
    %432 = vmatpush1.msra.mxu0 %v302
    %433 = vmatprep.subr.mxu0 0.0
    %434 = vmatpush1.msra.mxu0 %v301
    %435 = vmatprep.subr.mxu0 0.0
    %436 = vmatpush1.msra.mxu0 %v300
    %437 = vmatprep.subr.mxu0 0.0
    %438 = vmatpush1.msra.mxu0 %v299
    %439 = vmatprep.subr.mxu0 0.0
    %440 = vmatpush2.msra.mxu0 0.0
    %441 = vmatprep.subr.mxu0 0.0
    %442 = vmatpush2.msra.mxu0 0.0
    %443 = vmatprep.subr.mxu0 0.0
    %444 = vmatpush2.msra.mxu0 0.0
    %445 = vmatprep.subr.mxu0 0.0
    %446 = vmatpush2.msra.mxu0 0.0
    %447 = vmatprep.subr.mxu0 0.0
    %448 = vmatpush2.msra.mxu0 0.0
    %449 = vmatprep.subr.mxu0 0.0
    %450 = vmatpush2.msra.mxu0 0.0
    %451 = vmatprep.subr.mxu0 0.0
    %452 = vmatpush2.msra.mxu0 0.0
    %453 = vmatprep.subr.mxu0 0.0
    %454 = vmatpush2.msra.mxu0 0.0
    %455 = vmatprep.subr.mxu0 0.0
    %456 = vmatpush2.msra.mxu0 0.0
    %457 = vmatprep.subr.mxu0 0.0
    %458 = vmatpush2.msra.mxu0 0.0
    %459 = vmatprep.subr.mxu0 0.0
    %460 = vmatpush2.msra.mxu0 0.0
    %461 = vmatprep.subr.mxu0 0.0
    %462 = vmatpush2.msra.mxu0 0.0
    %463 = vmatprep.subr.mxu0 0.0
    %464 = vmatpush2.msra.mxu0 0.0
    %465 = vmatprep.subr.mxu0 0.0
    %466 = vmatpush2.msra.mxu0 0.0
    %467 = vmatprep.subr.mxu0 0.0
    %468 = vmatpush2.msra.mxu0 0.0
    %469 = vmatprep.subr.mxu0 0.0
    %470 = vmatpush2.msra.mxu0 0.0
    %471 = vmatprep.mubr.f32.mxu0 0.0
    %472 = vmatmul.mubr.f32.gmra.mxu0 %v314
    %v473 = vpop.f32.mrf.mxu0
    %v474 = vadd.f32 %v389, %v473
    %v475 = vpop.f32.mrf.mxu0
    %476 = vmatprep.mubr.f32.mxu0 0.0
    %477 = vmatmul.mubr.f32.gmra.mxu0 %v316
    %v478 = vpop.f32.mrf.mxu0
    %v479 = vadd.f32 %v394, %v478
    %v480 = vpop.f32.mrf.mxu0
    %481 = vmatprep.mubr.f32.mxu0 0.0
    %482 = vmatmul.mubr.f32.gmra.mxu0 %v318
    %v483 = vpop.f32.mrf.mxu0
    %v484 = vadd.f32 %v399, %v483
    %v485 = vpop.f32.mrf.mxu0
    %486 = vmatprep.mubr.f32.mxu0 0.0
    %487 = vmatmul.mubr.f32.gmra.mxu0 %v320
    %v488 = vpop.f32.mrf.mxu0
    %v489 = vadd.f32 %v404, %v488
    %v490 = vpop.f32.mrf.mxu0
    %491 = vdwg.mxu0
    %v492 = vsub.f32 0.0, %v474
    %v493 = vsub.f32 0.0, %v479
    %v494 = vsub.f32 0.0, %v484
    %v495 = vsub.f32 0.0, %v489
    %v496 = vmul.f32 %v492, 1.442695
    %v497 = vpow.pop %v496
    %v498 = vmul.f32 %v493, 1.442695
    %v499 = vpow.pop %v498
    %v500 = vmul.f32 %v494, 1.442695
    %v501 = vpow.pop %v500
    %v502 = vmul.f32 %v495, 1.442695
    %v503 = vpow.pop %v502
    %v504 = vadd.f32 %v497, 1.0
    %v505 = vadd.f32 %v499, 1.0
    %v506 = vadd.f32 %v501, 1.0
    %v507 = vadd.f32 %v503, 1.0
    %v508 = vrcp.pop %v504
    %v509 = vmul.f32 1.0, %v508
    %v510 = vrcp.pop %v505
    %v511 = vmul.f32 1.0, %v510
    %v512 = vrcp.pop %v506
    %v513 = vmul.f32 1.0, %v512
    %v514 = vrcp.pop %v507
    %v515 = vmul.f32 1.0, %v514
    %520 = vrot.lane.b32.xlu0 %v509, 64
    %v521 = vpop.permute.xlu0 %520
    %522 = vrot.lane.b32.xlu0 %v511, 64
    %v523 = vpop.permute.xlu0 %522
    %524 = vrot.lane.b32.xlu0 %v513, 64
    %v525 = vpop.permute.xlu0 %524
    %526 = vrot.lane.b32.xlu0 %v515, 64
    %v527 = vpop.permute.xlu0 %526
    %v532 = vmul.f32 %v474, %v521
    %v533 = vmul.f32 %v479, %v523
    %v534 = vmul.f32 %v484, %v525
    %v535 = vmul.f32 %v489, %v527
    %v536 = vadd.f32 %v532, %v144
    %v537 = vadd.f32 %v533, %v149
    %v538 = vadd.f32 %v534, %v154
    %v539 = vadd.f32 %v535, %v159
    %v540 = vmul.f32 %v536, 0.70710677
    %v541 = vmul.f32 %v537, 0.70710677
    %v542 = vmul.f32 %v538, 0.70710677
    %v543 = vmul.f32 %v539, 0.70710677
    %v546 = vrot.slane %v540, 6
    %v547 = vrot.slane %v541, 6
    %v548 = vsel %vm164, %v546, %v547
    %v552 = vsel %vm164, 0.0, %v546
    %v553 = vsel %vm164, %v547, 0.0
    %v556 = vrot.slane %v552, 1
    %v557 = vrot.slane %v548, 1
    %v558 = vsel %vm175, %v556, %v557
    %v559 = vrot.slane %v553, 1
    %v560 = vsel %vm175, %v557, %v559
    %561 = vrot.lane.b32.xlu0 %v558, 64
    %v562 = vpop.permute.xlu0 %561
    %563 = vrot.lane.b32.xlu0 %v560, 64
    %v564 = vpop.permute.xlu0 %563
    %v567 = vrot.slane %v552, 2
    %v568 = vrot.slane %v548, 2
    %v569 = vsel %vm187, %v567, %v568
    %v570 = vrot.slane %v553, 2
    %v571 = vsel %vm187, %v568, %v570
    %v574 = vrot.slane %v552, 3
    %v575 = vrot.slane %v548, 3
    %v576 = vsel %vm195, %v574, %v575
    %v577 = vrot.slane %v553, 3
    %v578 = vsel %vm195, %v575, %v577
    %579 = vrot.lane.b32.xlu0 %v576, 64
    %v580 = vpop.permute.xlu0 %579
    %581 = vrot.lane.b32.xlu0 %v578, 64
    %v582 = vpop.permute.xlu0 %581
    %v585 = vrot.slane %v552, 4
    %v586 = vrot.slane %v548, 4
    %v587 = vsel %vm73, %v585, %v586
    %v588 = vrot.slane %v553, 4
    %v589 = vsel %vm73, %v586, %v588
    %v590 = vsel %vm212, %v552, %v562
    %v591 = vsel %vm212, %v548, %v564
    %v592 = vsel %vm212, %v569, %v580
    %v593 = vsel %vm212, %v571, %v582
    %v596 = vrot.slane %v542, 6
    %v597 = vrot.slane %v543, 6
    %v598 = vsel %vm164, %v596, %v597
    %v602 = vsel %vm164, 0.0, %v596
    %v603 = vsel %vm164, %v597, 0.0
    %v606 = vrot.slane %v602, 1
    %v607 = vrot.slane %v598, 1
    %v608 = vsel %vm175, %v606, %v607
    %v609 = vrot.slane %v603, 1
    %v610 = vsel %vm175, %v607, %v609
    %611 = vrot.lane.b32.xlu0 %v608, 64
    %v612 = vpop.permute.xlu0 %611
    %613 = vrot.lane.b32.xlu0 %v610, 64
    %v614 = vpop.permute.xlu0 %613
    %v617 = vrot.slane %v602, 2
    %v618 = vrot.slane %v598, 2
    %v619 = vsel %vm187, %v617, %v618
    %v620 = vrot.slane %v603, 2
    %v621 = vsel %vm187, %v618, %v620
    %v624 = vrot.slane %v602, 3
    %v625 = vrot.slane %v598, 3
    %v626 = vsel %vm195, %v624, %v625
    %v627 = vrot.slane %v603, 3
    %v628 = vsel %vm195, %v625, %v627
    %629 = vrot.lane.b32.xlu0 %v626, 64
    %v630 = vpop.permute.xlu0 %629
    %631 = vrot.lane.b32.xlu0 %v628, 64
    %v632 = vpop.permute.xlu0 %631
    %v635 = vrot.slane %v602, 4
    %v636 = vrot.slane %v598, 4
    %v637 = vsel %vm73, %v635, %v636
    %v638 = vrot.slane %v603, 4
    %v639 = vsel %vm73, %v636, %v638
    %v640 = vsel %vm212, %v602, %v612
    %v641 = vsel %vm212, %v598, %v614
    %v642 = vsel %vm212, %v619, %v630
    %v643 = vsel %vm212, %v621, %v632
    %s644 = scalar_lea.vmem [#allocation2], 320
    %v645 = vld [vmem:[%s644] sm:$0xff]
    %v646 = vld [vmem:[%s644 + $0x8] sm:$0xff]
    %v647 = vld [vmem:[%s644 + $0x10] sm:$0xff]
    %v648 = vld [vmem:[%s644 + $0x18] sm:$0xff]
    %v649 = vld [vmem:[%s644 + $0x20] sm:$0xff]
    %v650 = vld [vmem:[%s644 + $0x28] sm:$0xff]
    %v651 = vld [vmem:[%s644 + $0x30] sm:$0xff]
    %v652 = vld [vmem:[%s644 + $0x38] sm:$0xff]
    %v653 = vld [vmem:[%s644 + $0x40] sm:$0xff]
    %v654 = vld [vmem:[%s644 + $0x48] sm:$0xff]
    %v655 = vld [vmem:[%s644 + $0x50] sm:$0xff]
    %v656 = vld [vmem:[%s644 + $0x58] sm:$0xff]
    %v657 = vld [vmem:[%s644 + $0x60] sm:$0xff]
    %v658 = vld [vmem:[%s644 + $0x68] sm:$0xff]
    %v659 = vld [vmem:[%s644 + $0x70] sm:$0xff]
    %v660 = vld [vmem:[%s644 + $0x78] sm:$0xff]
    %v661 = vld [vmem:[%s644 + $0x80] sm:$0xff]
    %v662 = vld [vmem:[%s644 + $0x88] sm:$0xff]
    %v663 = vld [vmem:[%s644 + $0x90] sm:$0xff]
    %v664 = vld [vmem:[%s644 + $0x98] sm:$0xff]
    %v665 = vld [vmem:[%s644 + $0xa0] sm:$0xff]
    %v666 = vld [vmem:[%s644 + $0xa8] sm:$0xff]
    %v667 = vld [vmem:[%s644 + $0xb0] sm:$0xff]
    %v668 = vld [vmem:[%s644 + $0xb8] sm:$0xff]
    %v669 = vld [vmem:[%s644 + $0xc0] sm:$0xff]
    %v670 = vld [vmem:[%s644 + $0xc8] sm:$0xff]
    %v671 = vld [vmem:[%s644 + $0xd0] sm:$0xff]
    %v672 = vld [vmem:[%s644 + $0xd8] sm:$0xff]
    %v673 = vld [vmem:[%s644 + $0xe0] sm:$0xff]
    %v674 = vld [vmem:[%s644 + $0xe8] sm:$0xff]
    %v675 = vld [vmem:[%s644 + $0xf0] sm:$0xff]
    %v676 = vld [vmem:[%s644 + $0xf8] sm:$0xff]
    %v677 = vld [vmem:[%s644 + $0x100] sm:$0xff]
    %v678 = vld [vmem:[%s644 + $0x108] sm:$0xff]
    %v679 = vld [vmem:[%s644 + $0x110] sm:$0xff]
    %v680 = vld [vmem:[%s644 + $0x118] sm:$0xff]
    %v681 = vld [vmem:[%s644 + $0x120] sm:$0xff]
    %v682 = vld [vmem:[%s644 + $0x128] sm:$0xff]
    %v683 = vld [vmem:[%s644 + $0x130] sm:$0xff]
    %v684 = vld [vmem:[%s644 + $0x138] sm:$0xff]
    %s685 = scalar_lea.vmem %s4, 1
    %v686 = vld [vmem:[%s685] sm:$0x1]
    %v688 = vlaneseq
    %v689 = vshrl.u32 %v688, 7
    %v690 = vsub.s32 0, %v689
    %v691 = vrot.slane %v686, %v690
    %v693 = vsel %vm212, %v587, 0
    %v695 = vsel %vm212, %v589, 0
    %v697 = vsel %vm212, %v637, 0
    %v699 = vsel %vm212, %v639, 0
    %701 = vmatprep.subr.mxu0 0.0
    %702 = vmatpush1.msra.mxu0 %v660
    %703 = vmatprep.subr.mxu0 0.0
    %704 = vmatpush1.msra.mxu0 %v659
    %705 = vmatprep.subr.mxu0 0.0
    %706 = vmatpush1.msra.mxu0 %v658
    %707 = vmatprep.subr.mxu0 0.0
    %708 = vmatpush1.msra.mxu0 %v657
    %709 = vmatprep.subr.mxu0 0.0
    %710 = vmatpush1.msra.mxu0 %v656
    %711 = vmatprep.subr.mxu0 0.0
    %712 = vmatpush1.msra.mxu0 %v655
    %713 = vmatprep.subr.mxu0 0.0
    %714 = vmatpush1.msra.mxu0 %v654
    %715 = vmatprep.subr.mxu0 0.0
    %716 = vmatpush1.msra.mxu0 %v653
    %717 = vmatprep.subr.mxu0 0.0
    %718 = vmatpush1.msra.mxu0 %v652
    %719 = vmatprep.subr.mxu0 0.0
    %720 = vmatpush1.msra.mxu0 %v651
    %721 = vmatprep.subr.mxu0 0.0
    %722 = vmatpush1.msra.mxu0 %v650
    %723 = vmatprep.subr.mxu0 0.0
    %724 = vmatpush1.msra.mxu0 %v649
    %725 = vmatprep.subr.mxu0 0.0
    %726 = vmatpush1.msra.mxu0 %v648
    %727 = vmatprep.subr.mxu0 0.0
    %728 = vmatpush1.msra.mxu0 %v647
    %729 = vmatprep.subr.mxu0 0.0
    %730 = vmatpush1.msra.mxu0 %v646
    %731 = vmatprep.subr.mxu0 0.0
    %732 = vmatpush1.msra.mxu0 %v645
    %733 = vmatprep.subr.mxu0 0.0
    %734 = vmatpush2.msra.mxu0 %v676
    %735 = vmatprep.subr.mxu0 0.0
    %736 = vmatpush2.msra.mxu0 %v675
    %737 = vmatprep.subr.mxu0 0.0
    %738 = vmatpush2.msra.mxu0 %v674
    %739 = vmatprep.subr.mxu0 0.0
    %740 = vmatpush2.msra.mxu0 %v673
    %741 = vmatprep.subr.mxu0 0.0
    %742 = vmatpush2.msra.mxu0 %v672
    %743 = vmatprep.subr.mxu0 0.0
    %744 = vmatpush2.msra.mxu0 %v671
    %745 = vmatprep.subr.mxu0 0.0
    %746 = vmatpush2.msra.mxu0 %v670
    %747 = vmatprep.subr.mxu0 0.0
    %748 = vmatpush2.msra.mxu0 %v669
    %749 = vmatprep.subr.mxu0 0.0
    %750 = vmatpush2.msra.mxu0 %v668
    %751 = vmatprep.subr.mxu0 0.0
    %752 = vmatpush2.msra.mxu0 %v667
    %753 = vmatprep.subr.mxu0 0.0
    %754 = vmatpush2.msra.mxu0 %v666
    %755 = vmatprep.subr.mxu0 0.0
    %756 = vmatpush2.msra.mxu0 %v665
    %757 = vmatprep.subr.mxu0 0.0
    %758 = vmatpush2.msra.mxu0 %v664
    %759 = vmatprep.subr.mxu0 0.0
    %760 = vmatpush2.msra.mxu0 %v663
    %761 = vmatprep.subr.mxu0 0.0
    %762 = vmatpush2.msra.mxu0 %v662
    %763 = vmatprep.subr.mxu0 0.0
    %764 = vmatpush2.msra.mxu0 %v661
    %765 = vmatprep.mubr.f32.mxu0 %v592
    %766 = vmatmul.mubr.f32.gmra.mxu0 %v590
    %v767 = vpop.f32.mrf.mxu0
    %v768 = vadd.f32 %v691, %v767
    %v769 = vpop.f32.mrf.mxu0
    %770 = vmatprep.mubr.f32.mxu0 %v593
    %771 = vmatmul.mubr.f32.gmra.mxu0 %v591
    %v772 = vpop.f32.mrf.mxu0
    %v773 = vadd.f32 %v691, %v772
    %v774 = vpop.f32.mrf.mxu0
    %775 = vmatprep.mubr.f32.mxu0 %v642
    %776 = vmatmul.mubr.f32.gmra.mxu0 %v640
    %v777 = vpop.f32.mrf.mxu0
    %v778 = vadd.f32 %v691, %v777
    %v779 = vpop.f32.mrf.mxu0
    %780 = vmatprep.mubr.f32.mxu0 %v643
    %781 = vmatmul.mubr.f32.gmra.mxu0 %v641
    %v782 = vpop.f32.mrf.mxu0
    %v783 = vadd.f32 %v691, %v782
    %v784 = vpop.f32.mrf.mxu0
    %785 = vdwg.mxu0
    %786 = vmatprep.subr.mxu0 0.0
    %787 = vmatpush1.msra.mxu0 0.0
    %788 = vmatprep.subr.mxu0 0.0
    %789 = vmatpush1.msra.mxu0 0.0
    %790 = vmatprep.subr.mxu0 0.0
    %791 = vmatpush1.msra.mxu0 0.0
    %792 = vmatprep.subr.mxu0 0.0
    %793 = vmatpush1.msra.mxu0 0.0
    %794 = vmatprep.subr.mxu0 0.0
    %795 = vmatpush1.msra.mxu0 0.0
    %796 = vmatprep.subr.mxu0 0.0
    %797 = vmatpush1.msra.mxu0 0.0
    %798 = vmatprep.subr.mxu0 0.0
    %799 = vmatpush1.msra.mxu0 0.0
    %800 = vmatprep.subr.mxu0 0.0
    %801 = vmatpush1.msra.mxu0 0.0
    %802 = vmatprep.subr.mxu0 0.0
    %803 = vmatpush1.msra.mxu0 %v684
    %804 = vmatprep.subr.mxu0 0.0
    %805 = vmatpush1.msra.mxu0 %v683
    %806 = vmatprep.subr.mxu0 0.0
    %807 = vmatpush1.msra.mxu0 %v682
    %808 = vmatprep.subr.mxu0 0.0
    %809 = vmatpush1.msra.mxu0 %v681
    %810 = vmatprep.subr.mxu0 0.0
    %811 = vmatpush1.msra.mxu0 %v680
    %812 = vmatprep.subr.mxu0 0.0
    %813 = vmatpush1.msra.mxu0 %v679
    %814 = vmatprep.subr.mxu0 0.0
    %815 = vmatpush1.msra.mxu0 %v678
    %816 = vmatprep.subr.mxu0 0.0
    %817 = vmatpush1.msra.mxu0 %v677
    %818 = vmatprep.subr.mxu0 0.0
    %819 = vmatpush2.msra.mxu0 0.0
    %820 = vmatprep.subr.mxu0 0.0
    %821 = vmatpush2.msra.mxu0 0.0
    %822 = vmatprep.subr.mxu0 0.0
    %823 = vmatpush2.msra.mxu0 0.0
    %824 = vmatprep.subr.mxu0 0.0
    %825 = vmatpush2.msra.mxu0 0.0
    %826 = vmatprep.subr.mxu0 0.0
    %827 = vmatpush2.msra.mxu0 0.0
    %828 = vmatprep.subr.mxu0 0.0
    %829 = vmatpush2.msra.mxu0 0.0
    %830 = vmatprep.subr.mxu0 0.0
    %831 = vmatpush2.msra.mxu0 0.0
    %832 = vmatprep.subr.mxu0 0.0
    %833 = vmatpush2.msra.mxu0 0.0
    %834 = vmatprep.subr.mxu0 0.0
    %835 = vmatpush2.msra.mxu0 0.0
    %836 = vmatprep.subr.mxu0 0.0
    %837 = vmatpush2.msra.mxu0 0.0
    %838 = vmatprep.subr.mxu0 0.0
    %839 = vmatpush2.msra.mxu0 0.0
    %840 = vmatprep.subr.mxu0 0.0
    %841 = vmatpush2.msra.mxu0 0.0
    %842 = vmatprep.subr.mxu0 0.0
    %843 = vmatpush2.msra.mxu0 0.0
    %844 = vmatprep.subr.mxu0 0.0
    %845 = vmatpush2.msra.mxu0 0.0
    %846 = vmatprep.subr.mxu0 0.0
    %847 = vmatpush2.msra.mxu0 0.0
    %848 = vmatprep.subr.mxu0 0.0
    %849 = vmatpush2.msra.mxu0 0.0
    %850 = vmatprep.mubr.f32.mxu0 0.0
    %851 = vmatmul.mubr.f32.gmra.mxu0 %v693
    %v852 = vpop.f32.mrf.mxu0
    %v853 = vadd.f32 %v768, %v852
    %v854 = vpop.f32.mrf.mxu0
    %855 = vmatprep.mubr.f32.mxu0 0.0
    %856 = vmatmul.mubr.f32.gmra.mxu0 %v695
    %v857 = vpop.f32.mrf.mxu0
    %v858 = vadd.f32 %v773, %v857
    %v859 = vpop.f32.mrf.mxu0
    %860 = vmatprep.mubr.f32.mxu0 0.0
    %861 = vmatmul.mubr.f32.gmra.mxu0 %v697
    %v862 = vpop.f32.mrf.mxu0
    %v863 = vadd.f32 %v778, %v862
    %v864 = vpop.f32.mrf.mxu0
    %865 = vmatprep.mubr.f32.mxu0 0.0
    %866 = vmatmul.mubr.f32.gmra.mxu0 %v699
    %v867 = vpop.f32.mrf.mxu0
    %v868 = vadd.f32 %v783, %v867
    %v869 = vpop.f32.mrf.mxu0
    %870 = vdwg.mxu0
    %v871 = vsub.f32 0.0, %v853
    %v872 = vsub.f32 0.0, %v858
    %v873 = vsub.f32 0.0, %v863
    %v874 = vsub.f32 0.0, %v868
    %v875 = vmul.f32 %v871, 1.442695
    %v876 = vpow.pop %v875
    %v877 = vmul.f32 %v872, 1.442695
    %v878 = vpow.pop %v877
    %v879 = vmul.f32 %v873, 1.442695
    %v880 = vpow.pop %v879
    %v881 = vmul.f32 %v874, 1.442695
    %v882 = vpow.pop %v881
    %v883 = vadd.f32 %v876, 1.0
    %v884 = vadd.f32 %v878, 1.0
    %v885 = vadd.f32 %v880, 1.0
    %v886 = vadd.f32 %v882, 1.0
    %v887 = vrcp.pop %v883
    %v888 = vmul.f32 1.0, %v887
    %v889 = vrcp.pop %v884
    %v890 = vmul.f32 1.0, %v889
    %v891 = vrcp.pop %v885
    %v892 = vmul.f32 1.0, %v891
    %v893 = vrcp.pop %v886
    %v894 = vmul.f32 1.0, %v893
    %899 = vrot.lane.b32.xlu0 %v888, 64
    %v900 = vpop.permute.xlu0 %899
    %901 = vrot.lane.b32.xlu0 %v890, 64
    %v902 = vpop.permute.xlu0 %901
    %903 = vrot.lane.b32.xlu0 %v892, 64
    %v904 = vpop.permute.xlu0 %903
    %905 = vrot.lane.b32.xlu0 %v894, 64
    %v906 = vpop.permute.xlu0 %905
    %v911 = vmul.f32 %v853, %v900
    %v912 = vmul.f32 %v858, %v902
    %v913 = vmul.f32 %v863, %v904
    %v914 = vmul.f32 %v868, %v906
    %v915 = vadd.f32 %v911, %v540
    %v916 = vadd.f32 %v912, %v541
    %v917 = vadd.f32 %v913, %v542
    %v918 = vadd.f32 %v914, %v543
    %v919 = vmul.f32 %v915, 0.70710677
    %v920 = vmul.f32 %v916, 0.70710677
    %v921 = vmul.f32 %v917, 0.70710677
    %v922 = vmul.f32 %v918, 0.70710677
    %v925 = vrot.slane %v919, 6
    %v926 = vrot.slane %v920, 6
    %v927 = vsel %vm164, %v925, %v926
    %v931 = vsel %vm164, 0.0, %v925
    %v932 = vsel %vm164, %v926, 0.0
    %v935 = vrot.slane %v931, 1
    %v936 = vrot.slane %v927, 1
    %v937 = vsel %vm175, %v935, %v936
    %v938 = vrot.slane %v932, 1
    %v939 = vsel %vm175, %v936, %v938
    %940 = vrot.lane.b32.xlu0 %v937, 64
    %v941 = vpop.permute.xlu0 %940
    %942 = vrot.lane.b32.xlu0 %v939, 64
    %v943 = vpop.permute.xlu0 %942
    %v946 = vrot.slane %v931, 2
    %v947 = vrot.slane %v927, 2
    %v948 = vsel %vm187, %v946, %v947
    %v949 = vrot.slane %v932, 2
    %v950 = vsel %vm187, %v947, %v949
    %v953 = vrot.slane %v931, 3
    %v954 = vrot.slane %v927, 3
    %v955 = vsel %vm195, %v953, %v954
    %v956 = vrot.slane %v932, 3
    %v957 = vsel %vm195, %v954, %v956
    %958 = vrot.lane.b32.xlu0 %v955, 64
    %v959 = vpop.permute.xlu0 %958
    %960 = vrot.lane.b32.xlu0 %v957, 64
    %v961 = vpop.permute.xlu0 %960
    %v964 = vrot.slane %v931, 4
    %v965 = vrot.slane %v927, 4
    %v966 = vsel %vm73, %v964, %v965
    %v967 = vrot.slane %v932, 4
    %v968 = vsel %vm73, %v965, %v967
    %v969 = vsel %vm212, %v931, %v941
    %v970 = vsel %vm212, %v927, %v943
    %v971 = vsel %vm212, %v948, %v959
    %v972 = vsel %vm212, %v950, %v961
    %v975 = vrot.slane %v921, 6
    %v976 = vrot.slane %v922, 6
    %v977 = vsel %vm164, %v975, %v976
    %v981 = vsel %vm164, 0.0, %v975
    %v982 = vsel %vm164, %v976, 0.0
    %v985 = vrot.slane %v981, 1
    %v986 = vrot.slane %v977, 1
    %v987 = vsel %vm175, %v985, %v986
    %v988 = vrot.slane %v982, 1
    %v989 = vsel %vm175, %v986, %v988
    %990 = vrot.lane.b32.xlu0 %v987, 64
    %v991 = vpop.permute.xlu0 %990
    %992 = vrot.lane.b32.xlu0 %v989, 64
    %v993 = vpop.permute.xlu0 %992
    %v996 = vrot.slane %v981, 2
    %v997 = vrot.slane %v977, 2
    %v998 = vsel %vm187, %v996, %v997
    %v999 = vrot.slane %v982, 2
    %v1000 = vsel %vm187, %v997, %v999
    %v1003 = vrot.slane %v981, 3
    %v1004 = vrot.slane %v977, 3
    %v1005 = vsel %vm195, %v1003, %v1004
    %v1006 = vrot.slane %v982, 3
    %v1007 = vsel %vm195, %v1004, %v1006
    %1008 = vrot.lane.b32.xlu0 %v1005, 64
    %v1009 = vpop.permute.xlu0 %1008
    %1010 = vrot.lane.b32.xlu0 %v1007, 64
    %v1011 = vpop.permute.xlu0 %1010
    %v1014 = vrot.slane %v981, 4
    %v1015 = vrot.slane %v977, 4
    %v1016 = vsel %vm73, %v1014, %v1015
    %v1017 = vrot.slane %v982, 4
    %v1018 = vsel %vm73, %v1015, %v1017
    %v1019 = vsel %vm212, %v981, %v991
    %v1020 = vsel %vm212, %v977, %v993
    %v1021 = vsel %vm212, %v998, %v1009
    %v1022 = vsel %vm212, %v1000, %v1011
    %s1023 = scalar_lea.vmem [#allocation2], 640
    %v1024 = vld [vmem:[%s1023] sm:$0xff]
    %v1025 = vld [vmem:[%s1023 + $0x8] sm:$0xff]
    %v1026 = vld [vmem:[%s1023 + $0x10] sm:$0xff]
    %v1027 = vld [vmem:[%s1023 + $0x18] sm:$0xff]
    %v1028 = vld [vmem:[%s1023 + $0x20] sm:$0xff]
    %v1029 = vld [vmem:[%s1023 + $0x28] sm:$0xff]
    %v1030 = vld [vmem:[%s1023 + $0x30] sm:$0xff]
    %v1031 = vld [vmem:[%s1023 + $0x38] sm:$0xff]
    %v1032 = vld [vmem:[%s1023 + $0x40] sm:$0xff]
    %v1033 = vld [vmem:[%s1023 + $0x48] sm:$0xff]
    %v1034 = vld [vmem:[%s1023 + $0x50] sm:$0xff]
    %v1035 = vld [vmem:[%s1023 + $0x58] sm:$0xff]
    %v1036 = vld [vmem:[%s1023 + $0x60] sm:$0xff]
    %v1037 = vld [vmem:[%s1023 + $0x68] sm:$0xff]
    %v1038 = vld [vmem:[%s1023 + $0x70] sm:$0xff]
    %v1039 = vld [vmem:[%s1023 + $0x78] sm:$0xff]
    %v1040 = vld [vmem:[%s1023 + $0x80] sm:$0xff]
    %v1041 = vld [vmem:[%s1023 + $0x88] sm:$0xff]
    %v1042 = vld [vmem:[%s1023 + $0x90] sm:$0xff]
    %v1043 = vld [vmem:[%s1023 + $0x98] sm:$0xff]
    %v1044 = vld [vmem:[%s1023 + $0xa0] sm:$0xff]
    %v1045 = vld [vmem:[%s1023 + $0xa8] sm:$0xff]
    %v1046 = vld [vmem:[%s1023 + $0xb0] sm:$0xff]
    %v1047 = vld [vmem:[%s1023 + $0xb8] sm:$0xff]
    %v1048 = vld [vmem:[%s1023 + $0xc0] sm:$0xff]
    %v1049 = vld [vmem:[%s1023 + $0xc8] sm:$0xff]
    %v1050 = vld [vmem:[%s1023 + $0xd0] sm:$0xff]
    %v1051 = vld [vmem:[%s1023 + $0xd8] sm:$0xff]
    %v1052 = vld [vmem:[%s1023 + $0xe0] sm:$0xff]
    %v1053 = vld [vmem:[%s1023 + $0xe8] sm:$0xff]
    %v1054 = vld [vmem:[%s1023 + $0xf0] sm:$0xff]
    %v1055 = vld [vmem:[%s1023 + $0xf8] sm:$0xff]
    %v1056 = vld [vmem:[%s1023 + $0x100] sm:$0xff]
    %v1057 = vld [vmem:[%s1023 + $0x108] sm:$0xff]
    %v1058 = vld [vmem:[%s1023 + $0x110] sm:$0xff]
    %v1059 = vld [vmem:[%s1023 + $0x118] sm:$0xff]
    %v1060 = vld [vmem:[%s1023 + $0x120] sm:$0xff]
    %v1061 = vld [vmem:[%s1023 + $0x128] sm:$0xff]
    %v1062 = vld [vmem:[%s1023 + $0x130] sm:$0xff]
    %v1063 = vld [vmem:[%s1023 + $0x138] sm:$0xff]
    %s1064 = scalar_lea.vmem %s4, 2
    %v1065 = vld [vmem:[%s1064] sm:$0x1]
    %v1067 = vlaneseq
    %v1068 = vshrl.u32 %v1067, 7
    %v1069 = vsub.s32 0, %v1068
    %v1070 = vrot.slane %v1065, %v1069
    %v1072 = vsel %vm212, %v966, 0
    %v1074 = vsel %vm212, %v968, 0
    %v1076 = vsel %vm212, %v1016, 0
    %v1078 = vsel %vm212, %v1018, 0
    %1080 = vmatprep.subr.mxu0 0.0
    %1081 = vmatpush1.msra.mxu0 %v1039
    %1082 = vmatprep.subr.mxu0 0.0
    %1083 = vmatpush1.msra.mxu0 %v1038
    %1084 = vmatprep.subr.mxu0 0.0
    %1085 = vmatpush1.msra.mxu0 %v1037
    %1086 = vmatprep.subr.mxu0 0.0
    %1087 = vmatpush1.msra.mxu0 %v1036
    %1088 = vmatprep.subr.mxu0 0.0
    %1089 = vmatpush1.msra.mxu0 %v1035
    %1090 = vmatprep.subr.mxu0 0.0
    %1091 = vmatpush1.msra.mxu0 %v1034
    %1092 = vmatprep.subr.mxu0 0.0
    %1093 = vmatpush1.msra.mxu0 %v1033
    %1094 = vmatprep.subr.mxu0 0.0
    %1095 = vmatpush1.msra.mxu0 %v1032
    %1096 = vmatprep.subr.mxu0 0.0
    %1097 = vmatpush1.msra.mxu0 %v1031
    %1098 = vmatprep.subr.mxu0 0.0
    %1099 = vmatpush1.msra.mxu0 %v1030
    %1100 = vmatprep.subr.mxu0 0.0
    %1101 = vmatpush1.msra.mxu0 %v1029
    %1102 = vmatprep.subr.mxu0 0.0
    %1103 = vmatpush1.msra.mxu0 %v1028
    %1104 = vmatprep.subr.mxu0 0.0
    %1105 = vmatpush1.msra.mxu0 %v1027
    %1106 = vmatprep.subr.mxu0 0.0
    %1107 = vmatpush1.msra.mxu0 %v1026
    %1108 = vmatprep.subr.mxu0 0.0
    %1109 = vmatpush1.msra.mxu0 %v1025
    %1110 = vmatprep.subr.mxu0 0.0
    %1111 = vmatpush1.msra.mxu0 %v1024
    %1112 = vmatprep.subr.mxu0 0.0
    %1113 = vmatpush2.msra.mxu0 %v1055
    %1114 = vmatprep.subr.mxu0 0.0
    %1115 = vmatpush2.msra.mxu0 %v1054
    %1116 = vmatprep.subr.mxu0 0.0
    %1117 = vmatpush2.msra.mxu0 %v1053
    %1118 = vmatprep.subr.mxu0 0.0
    %1119 = vmatpush2.msra.mxu0 %v1052
    %1120 = vmatprep.subr.mxu0 0.0
    %1121 = vmatpush2.msra.mxu0 %v1051
    %1122 = vmatprep.subr.mxu0 0.0
    %1123 = vmatpush2.msra.mxu0 %v1050
    %1124 = vmatprep.subr.mxu0 0.0
    %1125 = vmatpush2.msra.mxu0 %v1049
    %1126 = vmatprep.subr.mxu0 0.0
    %1127 = vmatpush2.msra.mxu0 %v1048
    %1128 = vmatprep.subr.mxu0 0.0
    %1129 = vmatpush2.msra.mxu0 %v1047
    %1130 = vmatprep.subr.mxu0 0.0
    %1131 = vmatpush2.msra.mxu0 %v1046
    %1132 = vmatprep.subr.mxu0 0.0
    %1133 = vmatpush2.msra.mxu0 %v1045
    %1134 = vmatprep.subr.mxu0 0.0
    %1135 = vmatpush2.msra.mxu0 %v1044
    %1136 = vmatprep.subr.mxu0 0.0
    %1137 = vmatpush2.msra.mxu0 %v1043
    %1138 = vmatprep.subr.mxu0 0.0
    %1139 = vmatpush2.msra.mxu0 %v1042
    %1140 = vmatprep.subr.mxu0 0.0
    %1141 = vmatpush2.msra.mxu0 %v1041
    %1142 = vmatprep.subr.mxu0 0.0
    %1143 = vmatpush2.msra.mxu0 %v1040
    %1144 = vmatprep.mubr.f32.mxu0 %v971
    %1145 = vmatmul.mubr.f32.gmra.mxu0 %v969
    %v1146 = vpop.f32.mrf.mxu0
    %v1147 = vadd.f32 %v1070, %v1146
    %v1148 = vpop.f32.mrf.mxu0
    %1149 = vmatprep.mubr.f32.mxu0 %v972
    %1150 = vmatmul.mubr.f32.gmra.mxu0 %v970
    %v1151 = vpop.f32.mrf.mxu0
    %v1152 = vadd.f32 %v1070, %v1151
    %v1153 = vpop.f32.mrf.mxu0
    %1154 = vmatprep.mubr.f32.mxu0 %v1021
    %1155 = vmatmul.mubr.f32.gmra.mxu0 %v1019
    %v1156 = vpop.f32.mrf.mxu0
    %v1157 = vadd.f32 %v1070, %v1156
    %v1158 = vpop.f32.mrf.mxu0
    %1159 = vmatprep.mubr.f32.mxu0 %v1022
    %1160 = vmatmul.mubr.f32.gmra.mxu0 %v1020
    %v1161 = vpop.f32.mrf.mxu0
    %v1162 = vadd.f32 %v1070, %v1161
    %v1163 = vpop.f32.mrf.mxu0
    %1164 = vdwg.mxu0
    %1165 = vmatprep.subr.mxu0 0.0
    %1166 = vmatpush1.msra.mxu0 0.0
    %1167 = vmatprep.subr.mxu0 0.0
    %1168 = vmatpush1.msra.mxu0 0.0
    %1169 = vmatprep.subr.mxu0 0.0
    %1170 = vmatpush1.msra.mxu0 0.0
    %1171 = vmatprep.subr.mxu0 0.0
    %1172 = vmatpush1.msra.mxu0 0.0
    %1173 = vmatprep.subr.mxu0 0.0
    %1174 = vmatpush1.msra.mxu0 0.0
    %1175 = vmatprep.subr.mxu0 0.0
    %1176 = vmatpush1.msra.mxu0 0.0
    %1177 = vmatprep.subr.mxu0 0.0
    %1178 = vmatpush1.msra.mxu0 0.0
    %1179 = vmatprep.subr.mxu0 0.0
    %1180 = vmatpush1.msra.mxu0 0.0
    %1181 = vmatprep.subr.mxu0 0.0
    %1182 = vmatpush1.msra.mxu0 %v1063
    %1183 = vmatprep.subr.mxu0 0.0
    %1184 = vmatpush1.msra.mxu0 %v1062
    %1185 = vmatprep.subr.mxu0 0.0
    %1186 = vmatpush1.msra.mxu0 %v1061
    %1187 = vmatprep.subr.mxu0 0.0
    %1188 = vmatpush1.msra.mxu0 %v1060
    %1189 = vmatprep.subr.mxu0 0.0
    %1190 = vmatpush1.msra.mxu0 %v1059
    %1191 = vmatprep.subr.mxu0 0.0
    %1192 = vmatpush1.msra.mxu0 %v1058
    %1193 = vmatprep.subr.mxu0 0.0
    %1194 = vmatpush1.msra.mxu0 %v1057
    %1195 = vmatprep.subr.mxu0 0.0
    %1196 = vmatpush1.msra.mxu0 %v1056
    %1197 = vmatprep.subr.mxu0 0.0
    %1198 = vmatpush2.msra.mxu0 0.0
    %1199 = vmatprep.subr.mxu0 0.0
    %1200 = vmatpush2.msra.mxu0 0.0
    %1201 = vmatprep.subr.mxu0 0.0
    %1202 = vmatpush2.msra.mxu0 0.0
    %1203 = vmatprep.subr.mxu0 0.0
    %1204 = vmatpush2.msra.mxu0 0.0
    %1205 = vmatprep.subr.mxu0 0.0
    %1206 = vmatpush2.msra.mxu0 0.0
    %1207 = vmatprep.subr.mxu0 0.0
    %1208 = vmatpush2.msra.mxu0 0.0
    %1209 = vmatprep.subr.mxu0 0.0
    %1210 = vmatpush2.msra.mxu0 0.0
    %1211 = vmatprep.subr.mxu0 0.0
    %1212 = vmatpush2.msra.mxu0 0.0
    %1213 = vmatprep.subr.mxu0 0.0
    %1214 = vmatpush2.msra.mxu0 0.0
    %1215 = vmatprep.subr.mxu0 0.0
    %1216 = vmatpush2.msra.mxu0 0.0
    %1217 = vmatprep.subr.mxu0 0.0
    %1218 = vmatpush2.msra.mxu0 0.0
    %1219 = vmatprep.subr.mxu0 0.0
    %1220 = vmatpush2.msra.mxu0 0.0
    %1221 = vmatprep.subr.mxu0 0.0
    %1222 = vmatpush2.msra.mxu0 0.0
    %1223 = vmatprep.subr.mxu0 0.0
    %1224 = vmatpush2.msra.mxu0 0.0
    %1225 = vmatprep.subr.mxu0 0.0
    %1226 = vmatpush2.msra.mxu0 0.0
    %1227 = vmatprep.subr.mxu0 0.0
    %1228 = vmatpush2.msra.mxu0 0.0
    %1229 = vmatprep.mubr.f32.mxu0 0.0
    %1230 = vmatmul.mubr.f32.gmra.mxu0 %v1072
    %v1231 = vpop.f32.mrf.mxu0
    %v1232 = vadd.f32 %v1147, %v1231
    %v1233 = vpop.f32.mrf.mxu0
    %1234 = vmatprep.mubr.f32.mxu0 0.0
    %1235 = vmatmul.mubr.f32.gmra.mxu0 %v1074
    %v1236 = vpop.f32.mrf.mxu0
    %v1237 = vadd.f32 %v1152, %v1236
    %v1238 = vpop.f32.mrf.mxu0
    %1239 = vmatprep.mubr.f32.mxu0 0.0
    %1240 = vmatmul.mubr.f32.gmra.mxu0 %v1076
    %v1241 = vpop.f32.mrf.mxu0
    %v1242 = vadd.f32 %v1157, %v1241
    %v1243 = vpop.f32.mrf.mxu0
    %1244 = vmatprep.mubr.f32.mxu0 0.0
    %1245 = vmatmul.mubr.f32.gmra.mxu0 %v1078
    %v1246 = vpop.f32.mrf.mxu0
    %v1247 = vadd.f32 %v1162, %v1246
    %v1248 = vpop.f32.mrf.mxu0
    %1249 = vdwg.mxu0
    %v1250 = vsub.f32 0.0, %v1232
    %v1251 = vsub.f32 0.0, %v1237
    %v1252 = vsub.f32 0.0, %v1242
    %v1253 = vsub.f32 0.0, %v1247
    %v1254 = vmul.f32 %v1250, 1.442695
    %v1255 = vpow.pop %v1254
    %v1256 = vmul.f32 %v1251, 1.442695
    %v1257 = vpow.pop %v1256
    %v1258 = vmul.f32 %v1252, 1.442695
    %v1259 = vpow.pop %v1258
    %v1260 = vmul.f32 %v1253, 1.442695
    %v1261 = vpow.pop %v1260
    %v1262 = vadd.f32 %v1255, 1.0
    %v1263 = vadd.f32 %v1257, 1.0
    %v1264 = vadd.f32 %v1259, 1.0
    %v1265 = vadd.f32 %v1261, 1.0
    %v1266 = vrcp.pop %v1262
    %v1267 = vmul.f32 1.0, %v1266
    %v1268 = vrcp.pop %v1263
    %v1269 = vmul.f32 1.0, %v1268
    %v1270 = vrcp.pop %v1264
    %v1271 = vmul.f32 1.0, %v1270
    %v1272 = vrcp.pop %v1265
    %v1273 = vmul.f32 1.0, %v1272
    %1278 = vrot.lane.b32.xlu0 %v1267, 64
    %v1279 = vpop.permute.xlu0 %1278
    %1280 = vrot.lane.b32.xlu0 %v1269, 64
    %v1281 = vpop.permute.xlu0 %1280
    %1282 = vrot.lane.b32.xlu0 %v1271, 64
    %v1283 = vpop.permute.xlu0 %1282
    %1284 = vrot.lane.b32.xlu0 %v1273, 64
    %v1285 = vpop.permute.xlu0 %1284
    %v1290 = vmul.f32 %v1232, %v1279
    %v1291 = vmul.f32 %v1237, %v1281
    %v1292 = vmul.f32 %v1242, %v1283
    %v1293 = vmul.f32 %v1247, %v1285
    %v1294 = vadd.f32 %v1290, %v919
    %v1295 = vadd.f32 %v1291, %v920
    %v1296 = vadd.f32 %v1292, %v921
    %v1297 = vadd.f32 %v1293, %v922
    %v1298 = vmul.f32 %v1294, 0.70710677
    %v1299 = vmul.f32 %v1295, 0.70710677
    %v1300 = vmul.f32 %v1296, 0.70710677
    %v1301 = vmul.f32 %v1297, 0.70710677
    %1302 = vst.msk [vmem:[#allocation5] sm:$0xff] %vm212, %v1298
    %1303 = vst.msk [vmem:[#allocation5 + $0x8] sm:$0xff] %vm212, %v1299
    %s1304 = scalar_lea.vmem [#allocation5], 16
    %1305 = vst.msk [vmem:[%s1304] sm:$0xff] %vm212, %v1300
    %1306 = vst.msk [vmem:[%s1304 + $0x8] sm:$0xff] %vm212, %v1301
    // Predicated region
    $region26: #{encoder_forward.1} parent=1 // pred_check
      _
    $region27: #{encoder_forward.1} parent=1 // pred_check_branch
      %1308 = sbr.rel (0) target = $region29
    $region28: #{encoder_forward.1} parent=1 // pred_region
      %s1310 = ssub.s32 512, 512
      %1311 = vsyncadd [#allocation4], %s1310
      %s1312 = sshll.u32 [#allocation5], 4
      %s1313 = int_to_ptr.vmem [resolvable:$true] %s1312
      %1318 = dma.vmem_to_hbm [thread:$0]  %s1313, 512, %s5, [#allocation4], 128, 128, 8
    $region29: #{encoder_forward.1} parent=1 // pred_fallthru
      _
    // Predicated region
    $region30: #{encoder_forward.1} parent=1 // pred_check
      _
    $region31: #{encoder_forward.1} parent=1 // pred_check_branch
      %1320 = sbr.rel (0) target = $region33
    $region32: #{encoder_forward.1} parent=1 // pred_region
      %1321 = dma.done [#allocation4], 512
    $region33: #{encoder_forward.1} parent=1 // pred_fallthru
      _
    %1322 = vsyncpa [#allocation3], 1
    %1323 = vsyncpa [#allocation4], 1

</llo_original>
